<compile_context>
chip_gen: v7x
topology: tpu7x:2x2x1
jax: 0.10.0
libtpu: 0.0.40
codegen_flags: <defaults>
</compile_context>

<pallas_src>
import jax
import jax.numpy as jnp
from jax.experimental import pallas as pl
from jax.experimental.pallas import tpu as pltpu

# ---------------- config (small, consistent with a SigLIP vision tower) -------
BATCH = 2
IN_CH = 3
IMG = 32
PATCH = 8
NUM_PATCHES = (IMG // PATCH) ** 2        # 16 tokens per image (SigLIP: no CLS token)
HIDDEN = 128
HEADS = 4
HEAD_DIM = HIDDEN // HEADS               # 32
INTER = 256
LAYERS = 2
EPS = 1e-6                               # SigLIP layer_norm_eps
SELECT_LAYER = -2                        # mm_vision_select_layer default
CPP = IN_CH * PATCH * PATCH              # 192 = flattened patch length
TOKENS = BATCH * NUM_PATCHES             # 32 total token rows

# Encoder layers that actually contribute to hidden_states[SELECT_LAYER].
LAYERS_USED = (LAYERS + 1 + SELECT_LAYER) if SELECT_LAYER < 0 else SELECT_LAYER
assert 1 <= LAYERS_USED <= LAYERS
NUM_VECS = 8   # packed rows: ln1_g, ln1_b, bo, ln2_g, ln2_b, b2, pad, pad


# ---------------- shared math helpers (used in kernel and reference) -----------
def _layer_norm(x, g, b):
    mu = jnp.mean(x, axis=-1, keepdims=True)
    var = jnp.mean((x - mu) ** 2, axis=-1, keepdims=True)
    return (x - mu) * jax.lax.rsqrt(var + EPS) * g + b


def _gelu_tanh(x):
    # gelu_pytorch_tanh
    c = 0.7978845608028654  # sqrt(2/pi)
    return 0.5 * x * (1.0 + jnp.tanh(c * (x + 0.044715 * x * x * x)))


# ---------------- fused tower kernel --------------------------------------------
def tower_kernel(patches_ref, patch_w_ref, pos_ref,
                 wqkv_ref, wo_ref, w1_ref, w2_ref, vecs_ref, bqkv_ref, b1_ref,
                 out_ref):
    f32 = jnp.float32
    bf16 = jnp.bfloat16
    T = NUM_PATCHES   # this program's token count (one image)

    # ---- patch embedding: (T, CPP) @ (CPP, H) + (pos + conv bias) ----
    x = jnp.dot(patches_ref[...], patch_w_ref[...],
                preferred_element_type=f32) + pos_ref[...]        # (T, H) f32

    for l in range(LAYERS_USED):                                  # static unroll (tiny)
        vecs = vecs_ref[l]                                        # (NUM_VECS, H) f32
        ln1_g, ln1_b, bo = vecs[0:1], vecs[1:2], vecs[2:3]
        ln2_g, ln2_b, b2 = vecs[3:4], vecs[4:5], vecs[5:6]

        # ---- self-attention block ----
        xn = _layer_norm(x, ln1_g, ln1_b)
        # 1/sqrt(HEAD_DIM) is pre-folded into the wq slice and bq slice at pack time.
        qkv = jnp.dot(xn.astype(bf16), wqkv_ref[l],
                      preferred_element_type=f32) + bqkv_ref[l]   # (T, 3H) f32
        q = qkv[:, 0:HIDDEN].astype(bf16)
        k = qkv[:, HIDDEN:2 * HIDDEN].astype(bf16)
        v = qkv[:, 2 * HIDDEN:3 * HIDDEN].astype(bf16)

        ctx_heads = []
        for h in range(HEADS):                                    # static unroll
            sl = slice(h * HEAD_DIM, (h + 1) * HEAD_DIM)
            s = jax.lax.dot_general(q[:, sl], k[:, sl],
                                    (((1,), (1,)), ((), ())),
                                    preferred_element_type=f32)   # (T, T)
            s = s - jnp.max(s, axis=-1, keepdims=True)
            p = jnp.exp(s)
            p = p / jnp.sum(p, axis=-1, keepdims=True)
            ctx_heads.append(jnp.dot(p.astype(bf16), v[:, sl],
                                     preferred_element_type=f32))  # (T, HEAD_DIM)
        # Single full-depth output projection instead of 4 depth-32 matmuls:
        ctx = jnp.concatenate(ctx_heads, axis=-1).astype(bf16)    # (T, H)
        x = x + jnp.dot(ctx, wo_ref[l], preferred_element_type=f32) + bo

        # ---- MLP block ----
        xn2 = _layer_norm(x, ln2_g, ln2_b)
        h1 = jnp.dot(xn2.astype(bf16), w1_ref[l],
                     preferred_element_type=f32) + b1_ref[l]
        h1 = _gelu_tanh(h1)
        x = x + jnp.dot(h1.astype(bf16), w2_ref[l],
                        preferred_element_type=f32) + b2

    out_ref[...] = x.astype(out_ref.dtype)


def _tower_pallas_call(out_dtype):
    # One program per image; weights are broadcast (same block index every step).
    in_specs = [
        pl.BlockSpec((NUM_PATCHES, CPP), lambda b: (b, 0)),                      # patches (bf16)
        pl.BlockSpec((CPP, HIDDEN), lambda b: (0, 0)),                           # patch_w (bf16)
        pl.BlockSpec((NUM_PATCHES, HIDDEN), lambda b: (0, 0)),                   # pos + conv bias
        pl.BlockSpec((LAYERS_USED, HIDDEN, 3 * HIDDEN), lambda b: (0, 0, 0)),    # fused qkv weight
        pl.BlockSpec((LAYERS_USED, HIDDEN, HIDDEN), lambda b: (0, 0, 0)),        # wo
        pl.BlockSpec((LAYERS_USED, HIDDEN, INTER), lambda b: (0, 0, 0)),         # w1
        pl.BlockSpec((LAYERS_USED, INTER, HIDDEN), lambda b: (0, 0, 0)),         # w2
        pl.BlockSpec((LAYERS_USED, NUM_VECS, HIDDEN), lambda b: (0, 0, 0)),      # packed ln/bias vecs
        pl.BlockSpec((LAYERS_USED, 1, 3 * HIDDEN), lambda b: (0, 0, 0)),         # fused qkv bias
        pl.BlockSpec((LAYERS_USED, 1, INTER), lambda b: (0, 0, 0)),              # fc1 bias
    ]
    return pl.pallas_call(
        tower_kernel,
        out_shape=jax.ShapeDtypeStruct((TOKENS, HIDDEN), out_dtype),
        grid=(BATCH,),
        in_specs=in_specs,
        out_specs=pl.BlockSpec((NUM_PATCHES, HIDDEN), lambda b: (b, 0)),
        compiler_params=pltpu.CompilerParams(
            dimension_semantics=("parallel",),
            vmem_limit_bytes=32 * 1024 * 1024,
        ),
    )


# ---------------- forward (VisionTowerDynamicS2.forward) -----------------------
def extract_patches(images):
    # NCHW -> (B*P, C*p*p); patch flattened in (C, p, p) order, matching how the
    # PyTorch conv-as-matmul weight (hidden, C, p, p) would be flattened.
    # Cast to bf16 here (the kernel consumes bf16 matmul operands anyway).
    B = images.shape[0]
    x = images.reshape(B, IN_CH, IMG // PATCH, PATCH, IMG // PATCH, PATCH)
    x = x.transpose(0, 2, 4, 1, 3, 5)
    return x.reshape(B * NUM_PATCHES, CPP).astype(jnp.bfloat16)


@jax.jit
def vision_tower_dynamic_s2_forward(images, packed):
    patches = extract_patches(images)
    h = _tower_pallas_call(images.dtype)(
        patches, packed['patch_w'], packed['pos'],
        packed['wqkv'], packed['wo'], packed['w1'], packed['w2'],
        packed['vecs'], packed['bqkv'], packed['b1'])
    feats = h.reshape(BATCH, NUM_PATCHES, HIDDEN)[:, 1:]   # select_feature='patch'
    # TODO(synk): the S2 multi-scale / resize path is dead code in VisionTowerDynamicS2.forward
    # (forward just calls forward_feature); scales only affect the hidden_size property.
    return feats                                            # already images.dtype


# ---------------- parameter packing (done once, outside the hot path) ----------
def pack_params(params):
    bf16 = jnp.bfloat16
    scale = HEAD_DIM ** -0.5
    used = params['layers'][:LAYERS_USED]   # layers past the selected hidden state are dead

    def vec_rows(L):
        rows = jnp.concatenate([L['ln1_g'], L['ln1_b'], L['bo'],
                                L['ln2_g'], L['ln2_b'], L['b2']], axis=0)     # (6, H)
        return jnp.concatenate([rows, jnp.zeros((NUM_VECS - 6, HIDDEN),
                                                jnp.float32)], axis=0)        # (8, H)

    return {
        'patch_w': params['patch_w'].astype(bf16),
        # conv bias + position embedding (per image, shared across the batch)
        'pos': (params['pos'] + params['patch_b']).astype(jnp.float32),
        # 1/sqrt(head_dim) folded into the wq / bq slices at pack time
        'wqkv': jnp.stack([jnp.concatenate([L['wq'] * scale, L['wk'], L['wv']], axis=1)
                           for L in used]).astype(bf16),
        'bqkv': jnp.stack([jnp.concatenate([L['bq'] * scale, L['bk'], L['bv']], axis=1)
                           for L in used]).astype(jnp.float32),
        'wo': jnp.stack([L['wo'] for L in used]).astype(bf16),
        'w1': jnp.stack([L['w1'] for L in used]).astype(bf16),
        'w2': jnp.stack([L['w2'] for L in used]).astype(bf16),
        'vecs': jnp.stack([vec_rows(L) for L in used]),
        'b1': jnp.stack([L['b1'] for L in used]),
    }


# ---------------- pure-JAX reference (full tower, all layers) -------------------
def _round_bf16(w):
    return w.astype(jnp.bfloat16).astype(jnp.float32)


def _ref_forward(images, params):
    # Runs ALL layers then selects hidden_states[SELECT_LAYER], proving the
    # dead-layer skip is semantically identical. Weights/patches are bf16-rounded
    # to match the kernel's stored precision; math is f32.
    patches = extract_patches(images).astype(jnp.float32)   # bf16-rounded like the kernel
    h = patches @ _round_bf16(params['patch_w']) + params['patch_b'] \
        + jnp.tile(params['pos'], (BATCH, 1))
    hidden_states = [h]
    for lp in params['layers']:
        x = h.reshape(BATCH, NUM_PATCHES, HIDDEN)
        xn = _layer_norm(x, lp['ln1_g'], lp['ln1_b'])
        q = xn @ _round_bf16(lp['wq']) + lp['bq']
        k = xn @ _round_bf16(lp['wk']) + lp['bk']
        v = xn @ _round_bf16(lp['wv']) + lp['bv']

        def heads(t):
            return t.reshape(BATCH, NUM_PATCHES, HEADS, HEAD_DIM).transpose(0, 2, 1, 3)
        qh = heads(q) * HEAD_DIM ** -0.5
        kh, vh = heads(k), heads(v)
        s = jnp.einsum('bhqd,bhkd->bhqk', qh, kh)
        p = jax.nn.softmax(s, axis=-1)
        ctx = jnp.einsum('bhqk,bhkd->bhqd', p, vh).transpose(0, 2, 1, 3)
        ctx = ctx.reshape(BATCH, NUM_PATCHES, HIDDEN)
        x = x + (ctx @ _round_bf16(lp['wo']) + lp['bo'])
        xn2 = _layer_norm(x, lp['ln2_g'], lp['ln2_b'])
        x = x + (_gelu_tanh(xn2 @ _round_bf16(lp['w1']) + lp['b1'])
                 @ _round_bf16(lp['w2']) + lp['b2'])
        h = x.reshape(BATCH * NUM_PATCHES, HIDDEN)
        hidden_states.append(h)
    feats = hidden_states[SELECT_LAYER].reshape(BATCH, NUM_PATCHES, HIDDEN)[:, 1:]
    return feats.astype(images.dtype)


# ---------------- deterministic parameter init ----------------------------------
def init_params(key):
    def nrm(k, shape, scale=0.02):
        return scale * jax.random.normal(k, shape, dtype=jnp.float32)

    keys = jax.random.split(key, 3 + LAYERS)
    params = {
        'patch_w': nrm(keys[0], (CPP, HIDDEN)),
        'patch_b': nrm(keys[1], (1, HIDDEN)),
        'pos': nrm(keys[2], (NUM_PATCHES, HIDDEN)),
        'layers': [],
    }
    for i in range(LAYERS):
        ks = jax.random.split(keys[3 + i], 12)
        params['layers'].append({
            'ln1_g': jnp.ones((1, HIDDEN), jnp.float32),
            'ln1_b': jnp.zeros((1, HIDDEN), jnp.float32),
            'wq': nrm(ks[0], (HIDDEN, HIDDEN)), 'bq': nrm(ks[1], (1, HIDDEN)),
            'wk': nrm(ks[2], (HIDDEN, HIDDEN)), 'bk': nrm(ks[3], (1, HIDDEN)),
            'wv': nrm(ks[4], (HIDDEN, HIDDEN)), 'bv': nrm(ks[5], (1, HIDDEN)),
            'wo': nrm(ks[6], (HIDDEN, HIDDEN)), 'bo': nrm(ks[7], (1, HIDDEN)),
            'ln2_g': jnp.ones((1, HIDDEN), jnp.float32),
            'ln2_b': jnp.zeros((1, HIDDEN), jnp.float32),
            'w1': nrm(ks[8], (HIDDEN, INTER)), 'b1': nrm(ks[9], (1, INTER)),
            'w2': nrm(ks[10], (INTER, HIDDEN)), 'b2': nrm(ks[11], (1, HIDDEN)),
        })
    return params


# ---------------- main -----------------------------------------------------------
if __name__ == "__main__":
    key = jax.random.PRNGKey(0)
    k_img, k_par = jax.random.split(key)
    images = jax.random.normal(k_img, (BATCH, IN_CH, IMG, IMG), dtype=jnp.float32)
    params = init_params(k_par)
    packed = pack_params(params)

    out = vision_tower_dynamic_s2_forward(images, packed)
    out = jax.block_until_ready(out)

    ref = _ref_forward(images, params)
    assert out.shape == (BATCH, NUM_PATCHES - 1, HIDDEN), out.shape
    # bf16 matmul operands (f32 accumulation) -> relaxed tolerance.
    assert jnp.allclose(out, ref, atol=2e-2, rtol=2e-2), \
        f"mismatch vs reference: max abs err {jnp.max(jnp.abs(out - ref))}"

    print("KERNEL_OK")
</pallas_src>

<mosaic_0001>
module attributes {stable_mosaic.version = 11 : i64} {
  func.func @tower_kernel(%arg0: i32, %arg1: memref<16x192xbf16, #tpu.memory_space<vmem>>, %arg2: memref<192x128xbf16, #tpu.memory_space<vmem>>, %arg3: memref<16x128xf32, #tpu.memory_space<vmem>>, %arg4: memref<1x128x384xbf16, #tpu.memory_space<vmem>>, %arg5: memref<1x128x128xbf16, #tpu.memory_space<vmem>>, %arg6: memref<1x128x256xbf16, #tpu.memory_space<vmem>>, %arg7: memref<1x256x128xbf16, #tpu.memory_space<vmem>>, %arg8: memref<1x8x128xf32, #tpu.memory_space<vmem>>, %arg9: memref<1x1x384xf32, #tpu.memory_space<vmem>>, %arg10: memref<1x1x256xf32, #tpu.memory_space<vmem>>, %arg11: memref<16x128xf32, #tpu.memory_space<vmem>>) attributes {dimension_semantics = [#tpu.dimension_semantics<parallel>], iteration_bounds = array<i64: 2>, scalar_prefetch = 0 : i64, scratch_operands = 0 : i64, tpu.core_type = #tpu.core_type<tc>, window_params = [{transform_indices = @transform_0, window_bounds = array<i64: 16, 192>}, {pipeline_mode = #tpu.pipeline_mode<synchronous>, transform_indices = @transform_1, window_bounds = array<i64: 192, 128>}, {pipeline_mode = #tpu.pipeline_mode<synchronous>, transform_indices = @transform_2, window_bounds = array<i64: 16, 128>}, {pipeline_mode = #tpu.pipeline_mode<synchronous>, transform_indices = @transform_3, window_bounds = array<i64: 1, 128, 384>}, {pipeline_mode = #tpu.pipeline_mode<synchronous>, transform_indices = @transform_4, window_bounds = array<i64: 1, 128, 128>}, {pipeline_mode = #tpu.pipeline_mode<synchronous>, transform_indices = @transform_5, window_bounds = array<i64: 1, 128, 256>}, {pipeline_mode = #tpu.pipeline_mode<synchronous>, transform_indices = @transform_6, window_bounds = array<i64: 1, 256, 128>}, {pipeline_mode = #tpu.pipeline_mode<synchronous>, transform_indices = @transform_7, window_bounds = array<i64: 1, 8, 128>}, {pipeline_mode = #tpu.pipeline_mode<synchronous>, transform_indices = @transform_8, window_bounds = array<i64: 1, 1, 384>}, {pipeline_mode = #tpu.pipeline_mode<synchronous>, transform_indices = @transform_9, window_bounds = array<i64: 1, 1, 256>}, {transform_indices = @transform_10, window_bounds = array<i64: 16, 128>}]} {
    %c0 = arith.constant 0 : index
    %c0_0 = arith.constant 0 : index
    %0 = vector.load %arg1[%c0, %c0_0] : memref<16x192xbf16, #tpu.memory_space<vmem>>, vector<16x192xbf16>
    %c0_1 = arith.constant 0 : index
    %c0_2 = arith.constant 0 : index
    %1 = vector.load %arg2[%c0_1, %c0_2] : memref<192x128xbf16, #tpu.memory_space<vmem>>, vector<192x128xbf16>
    %cst = arith.constant dense<0.000000e+00> : vector<16x128xf32>
    %2 = tpu.matmul %0, %1, %cst {dimension_numbers = #tpu.dot_dimension_numbers<[1], [0], [0], [1], [0, 0, 1, 1], [], []>} : vector<16x192xbf16>, vector<192x128xbf16>, vector<16x128xf32> -> vector<16x128xf32>
    %c0_3 = arith.constant 0 : index
    %c0_4 = arith.constant 0 : index
    %3 = vector.load %arg3[%c0_3, %c0_4] : memref<16x128xf32, #tpu.memory_space<vmem>>, vector<16x128xf32>
    %4 = arith.addf %2, %3 : vector<16x128xf32>
    %c0_5 = arith.constant 0 : index
    %c0_6 = arith.constant 0 : index
    %c0_7 = arith.constant 0 : index
    %5 = vector.load %arg8[%c0_5, %c0_6, %c0_7] : memref<1x8x128xf32, #tpu.memory_space<vmem>>, vector<1x8x128xf32>
    %6 = vector.shape_cast %5 : vector<1x8x128xf32> to vector<8x128xf32>
    %7 = vector.extract_strided_slice %6 {offsets = [0, 0], sizes = [1, 128], strides = [1, 1]} : vector<8x128xf32> to vector<1x128xf32>
    %8 = vector.extract_strided_slice %6 {offsets = [1, 0], sizes = [1, 128], strides = [1, 1]} : vector<8x128xf32> to vector<1x128xf32>
    %9 = vector.extract_strided_slice %6 {offsets = [2, 0], sizes = [1, 128], strides = [1, 1]} : vector<8x128xf32> to vector<1x128xf32>
    %10 = vector.extract_strided_slice %6 {offsets = [3, 0], sizes = [1, 128], strides = [1, 1]} : vector<8x128xf32> to vector<1x128xf32>
    %11 = vector.extract_strided_slice %6 {offsets = [4, 0], sizes = [1, 128], strides = [1, 1]} : vector<8x128xf32> to vector<1x128xf32>
    %12 = vector.extract_strided_slice %6 {offsets = [5, 0], sizes = [1, 128], strides = [1, 1]} : vector<8x128xf32> to vector<1x128xf32>
    %cst_8 = arith.constant dense<0.000000e+00> : vector<16xf32>
    %13 = vector.multi_reduction <add>, %4, %cst_8 [1] : vector<16x128xf32> to vector<16xf32>
    %14 = vector.shape_cast %13 : vector<16xf32> to vector<16x1xf32>
    %cst_9 = arith.constant 1.280000e+02 : f32
    %15 = vector.broadcast %cst_9 : f32 to vector<16x1xf32>
    %16 = arith.divf %14, %15 : vector<16x1xf32>
    %17 = vector.broadcast %16 : vector<16x1xf32> to vector<16x128xf32>
    %18 = arith.subf %4, %17 : vector<16x128xf32>
    %19 = arith.mulf %18, %18 : vector<16x128xf32>
    %cst_10 = arith.constant dense<0.000000e+00> : vector<16xf32>
    %20 = vector.multi_reduction <add>, %19, %cst_10 [1] : vector<16x128xf32> to vector<16xf32>
    %21 = vector.shape_cast %20 : vector<16xf32> to vector<16x1xf32>
    %cst_11 = arith.constant 1.280000e+02 : f32
    %22 = vector.broadcast %cst_11 : f32 to vector<16x1xf32>
    %23 = arith.divf %21, %22 : vector<16x1xf32>
    %24 = vector.broadcast %16 : vector<16x1xf32> to vector<16x128xf32>
    %25 = arith.subf %4, %24 : vector<16x128xf32>
    %cst_12 = arith.constant 9.99999997E-7 : f32
    %26 = vector.broadcast %cst_12 : f32 to vector<16x1xf32>
    %27 = arith.addf %23, %26 : vector<16x1xf32>
    %28 = math.rsqrt %27 : vector<16x1xf32>
    %29 = vector.broadcast %28 : vector<16x1xf32> to vector<16x128xf32>
    %30 = arith.mulf %25, %29 : vector<16x128xf32>
    %31 = vector.broadcast %7 : vector<1x128xf32> to vector<16x128xf32>
    %32 = arith.mulf %30, %31 : vector<16x128xf32>
    %33 = vector.broadcast %8 : vector<1x128xf32> to vector<16x128xf32>
    %34 = arith.addf %32, %33 : vector<16x128xf32>
    %35 = arith.truncf %34 : vector<16x128xf32> to vector<16x128xbf16>
    %c0_13 = arith.constant 0 : index
    %c0_14 = arith.constant 0 : index
    %c0_15 = arith.constant 0 : index
    %36 = vector.load %arg4[%c0_13, %c0_14, %c0_15] : memref<1x128x384xbf16, #tpu.memory_space<vmem>>, vector<1x128x384xbf16>
    %37 = vector.shape_cast %36 : vector<1x128x384xbf16> to vector<128x384xbf16>
    %cst_16 = arith.constant dense<0.000000e+00> : vector<16x384xf32>
    %38 = tpu.matmul %35, %37, %cst_16 {dimension_numbers = #tpu.dot_dimension_numbers<[1], [0], [0], [1], [0, 0, 1, 1], [], []>} : vector<16x128xbf16>, vector<128x384xbf16>, vector<16x384xf32> -> vector<16x384xf32>
    %c0_17 = arith.constant 0 : index
    %c0_18 = arith.constant 0 : index
    %c0_19 = arith.constant 0 : index
    %39 = vector.load %arg9[%c0_17, %c0_18, %c0_19] : memref<1x1x384xf32, #tpu.memory_space<vmem>>, vector<1x1x384xf32>
    %40 = vector.shape_cast %39 : vector<1x1x384xf32> to vector<1x384xf32>
    %41 = vector.broadcast %40 : vector<1x384xf32> to vector<16x384xf32>
    %42 = arith.addf %38, %41 : vector<16x384xf32>
    %43 = vector.extract_strided_slice %42 {offsets = [0, 0], sizes = [16, 128], strides = [1, 1]} : vector<16x384xf32> to vector<16x128xf32>
    %44 = arith.truncf %43 : vector<16x128xf32> to vector<16x128xbf16>
    %45 = vector.extract_strided_slice %42 {offsets = [0, 128], sizes = [16, 128], strides = [1, 1]} : vector<16x384xf32> to vector<16x128xf32>
    %46 = arith.truncf %45 : vector<16x128xf32> to vector<16x128xbf16>
    %47 = vector.extract_strided_slice %42 {offsets = [0, 256], sizes = [16, 128], strides = [1, 1]} : vector<16x384xf32> to vector<16x128xf32>
    %48 = arith.truncf %47 : vector<16x128xf32> to vector<16x128xbf16>
    %49 = vector.extract_strided_slice %44 {offsets = [0, 0], sizes = [16, 32], strides = [1, 1]} : vector<16x128xbf16> to vector<16x32xbf16>
    %50 = vector.extract_strided_slice %46 {offsets = [0, 0], sizes = [16, 32], strides = [1, 1]} : vector<16x128xbf16> to vector<16x32xbf16>
    %cst_20 = arith.constant dense<0.000000e+00> : vector<16x16xf32>
    %51 = tpu.matmul %49, %50, %cst_20 {dimension_numbers = #tpu.dot_dimension_numbers<[1], [1], [0], [0], [0, 0, 1, 0], [], []>} : vector<16x32xbf16>, vector<16x32xbf16>, vector<16x16xf32> -> vector<16x16xf32>
    %cst_21 = arith.constant dense<0xFF800000> : vector<16xf32>
    %52 = vector.multi_reduction <maximumf>, %51, %cst_21 [1] : vector<16x16xf32> to vector<16xf32>
    %53 = vector.shape_cast %52 : vector<16xf32> to vector<16x1xf32>
    %54 = vector.broadcast %53 : vector<16x1xf32> to vector<16x16xf32>
    %55 = arith.subf %51, %54 : vector<16x16xf32>
    %56 = math.exp %55 : vector<16x16xf32>
    %cst_22 = arith.constant dense<0.000000e+00> : vector<16xf32>
    %57 = vector.multi_reduction <add>, %56, %cst_22 [1] : vector<16x16xf32> to vector<16xf32>
    %58 = vector.shape_cast %57 : vector<16xf32> to vector<16x1xf32>
    %59 = vector.broadcast %58 : vector<16x1xf32> to vector<16x16xf32>
    %60 = arith.divf %56, %59 : vector<16x16xf32>
    %61 = arith.truncf %60 : vector<16x16xf32> to vector<16x16xbf16>
    %62 = vector.extract_strided_slice %48 {offsets = [0, 0], sizes = [16, 32], strides = [1, 1]} : vector<16x128xbf16> to vector<16x32xbf16>
    %cst_23 = arith.constant dense<0.000000e+00> : vector<16x32xf32>
    %63 = tpu.matmul %61, %62, %cst_23 {dimension_numbers = #tpu.dot_dimension_numbers<[1], [0], [0], [1], [0, 0, 1, 1], [], []>} : vector<16x16xbf16>, vector<16x32xbf16>, vector<16x32xf32> -> vector<16x32xf32>
    %64 = vector.extract_strided_slice %44 {offsets = [0, 32], sizes = [16, 32], strides = [1, 1]} : vector<16x128xbf16> to vector<16x32xbf16>
    %65 = vector.extract_strided_slice %46 {offsets = [0, 32], sizes = [16, 32], strides = [1, 1]} : vector<16x128xbf16> to vector<16x32xbf16>
    %cst_24 = arith.constant dense<0.000000e+00> : vector<16x16xf32>
    %66 = tpu.matmul %64, %65, %cst_24 {dimension_numbers = #tpu.dot_dimension_numbers<[1], [1], [0], [0], [0, 0, 1, 0], [], []>} : vector<16x32xbf16>, vector<16x32xbf16>, vector<16x16xf32> -> vector<16x16xf32>
    %cst_25 = arith.constant dense<0xFF800000> : vector<16xf32>
    %67 = vector.multi_reduction <maximumf>, %66, %cst_25 [1] : vector<16x16xf32> to vector<16xf32>
    %68 = vector.shape_cast %67 : vector<16xf32> to vector<16x1xf32>
    %69 = vector.broadcast %68 : vector<16x1xf32> to vector<16x16xf32>
    %70 = arith.subf %66, %69 : vector<16x16xf32>
    %71 = math.exp %70 : vector<16x16xf32>
    %cst_26 = arith.constant dense<0.000000e+00> : vector<16xf32>
    %72 = vector.multi_reduction <add>, %71, %cst_26 [1] : vector<16x16xf32> to vector<16xf32>
    %73 = vector.shape_cast %72 : vector<16xf32> to vector<16x1xf32>
    %74 = vector.broadcast %73 : vector<16x1xf32> to vector<16x16xf32>
    %75 = arith.divf %71, %74 : vector<16x16xf32>
    %76 = arith.truncf %75 : vector<16x16xf32> to vector<16x16xbf16>
    %77 = vector.extract_strided_slice %48 {offsets = [0, 32], sizes = [16, 32], strides = [1, 1]} : vector<16x128xbf16> to vector<16x32xbf16>
    %cst_27 = arith.constant dense<0.000000e+00> : vector<16x32xf32>
    %78 = tpu.matmul %76, %77, %cst_27 {dimension_numbers = #tpu.dot_dimension_numbers<[1], [0], [0], [1], [0, 0, 1, 1], [], []>} : vector<16x16xbf16>, vector<16x32xbf16>, vector<16x32xf32> -> vector<16x32xf32>
    %79 = vector.extract_strided_slice %44 {offsets = [0, 64], sizes = [16, 32], strides = [1, 1]} : vector<16x128xbf16> to vector<16x32xbf16>
    %80 = vector.extract_strided_slice %46 {offsets = [0, 64], sizes = [16, 32], strides = [1, 1]} : vector<16x128xbf16> to vector<16x32xbf16>
    %cst_28 = arith.constant dense<0.000000e+00> : vector<16x16xf32>
    %81 = tpu.matmul %79, %80, %cst_28 {dimension_numbers = #tpu.dot_dimension_numbers<[1], [1], [0], [0], [0, 0, 1, 0], [], []>} : vector<16x32xbf16>, vector<16x32xbf16>, vector<16x16xf32> -> vector<16x16xf32>
    %cst_29 = arith.constant dense<0xFF800000> : vector<16xf32>
    %82 = vector.multi_reduction <maximumf>, %81, %cst_29 [1] : vector<16x16xf32> to vector<16xf32>
    %83 = vector.shape_cast %82 : vector<16xf32> to vector<16x1xf32>
    %84 = vector.broadcast %83 : vector<16x1xf32> to vector<16x16xf32>
    %85 = arith.subf %81, %84 : vector<16x16xf32>
    %86 = math.exp %85 : vector<16x16xf32>
    %cst_30 = arith.constant dense<0.000000e+00> : vector<16xf32>
    %87 = vector.multi_reduction <add>, %86, %cst_30 [1] : vector<16x16xf32> to vector<16xf32>
    %88 = vector.shape_cast %87 : vector<16xf32> to vector<16x1xf32>
    %89 = vector.broadcast %88 : vector<16x1xf32> to vector<16x16xf32>
    %90 = arith.divf %86, %89 : vector<16x16xf32>
    %91 = arith.truncf %90 : vector<16x16xf32> to vector<16x16xbf16>
    %92 = vector.extract_strided_slice %48 {offsets = [0, 64], sizes = [16, 32], strides = [1, 1]} : vector<16x128xbf16> to vector<16x32xbf16>
    %cst_31 = arith.constant dense<0.000000e+00> : vector<16x32xf32>
    %93 = tpu.matmul %91, %92, %cst_31 {dimension_numbers = #tpu.dot_dimension_numbers<[1], [0], [0], [1], [0, 0, 1, 1], [], []>} : vector<16x16xbf16>, vector<16x32xbf16>, vector<16x32xf32> -> vector<16x32xf32>
    %94 = vector.extract_strided_slice %44 {offsets = [0, 96], sizes = [16, 32], strides = [1, 1]} : vector<16x128xbf16> to vector<16x32xbf16>
    %95 = vector.extract_strided_slice %46 {offsets = [0, 96], sizes = [16, 32], strides = [1, 1]} : vector<16x128xbf16> to vector<16x32xbf16>
    %cst_32 = arith.constant dense<0.000000e+00> : vector<16x16xf32>
    %96 = tpu.matmul %94, %95, %cst_32 {dimension_numbers = #tpu.dot_dimension_numbers<[1], [1], [0], [0], [0, 0, 1, 0], [], []>} : vector<16x32xbf16>, vector<16x32xbf16>, vector<16x16xf32> -> vector<16x16xf32>
    %cst_33 = arith.constant dense<0xFF800000> : vector<16xf32>
    %97 = vector.multi_reduction <maximumf>, %96, %cst_33 [1] : vector<16x16xf32> to vector<16xf32>
    %98 = vector.shape_cast %97 : vector<16xf32> to vector<16x1xf32>
    %99 = vector.broadcast %98 : vector<16x1xf32> to vector<16x16xf32>
    %100 = arith.subf %96, %99 : vector<16x16xf32>
    %101 = math.exp %100 : vector<16x16xf32>
    %cst_34 = arith.constant dense<0.000000e+00> : vector<16xf32>
    %102 = vector.multi_reduction <add>, %101, %cst_34 [1] : vector<16x16xf32> to vector<16xf32>
    %103 = vector.shape_cast %102 : vector<16xf32> to vector<16x1xf32>
    %104 = vector.broadcast %103 : vector<16x1xf32> to vector<16x16xf32>
    %105 = arith.divf %101, %104 : vector<16x16xf32>
    %106 = arith.truncf %105 : vector<16x16xf32> to vector<16x16xbf16>
    %107 = vector.extract_strided_slice %48 {offsets = [0, 96], sizes = [16, 32], strides = [1, 1]} : vector<16x128xbf16> to vector<16x32xbf16>
    %cst_35 = arith.constant dense<0.000000e+00> : vector<16x32xf32>
    %108 = tpu.matmul %106, %107, %cst_35 {dimension_numbers = #tpu.dot_dimension_numbers<[1], [0], [0], [1], [0, 0, 1, 1], [], []>} : vector<16x16xbf16>, vector<16x32xbf16>, vector<16x32xf32> -> vector<16x32xf32>
    %109 = tpu.concatenate %63, %78, %93, %108 in 1 : vector<16x32xf32>, vector<16x32xf32>, vector<16x32xf32>, vector<16x32xf32> -> vector<16x128xf32>
    %110 = arith.truncf %109 : vector<16x128xf32> to vector<16x128xbf16>
    %c0_36 = arith.constant 0 : index
    %c0_37 = arith.constant 0 : index
    %c0_38 = arith.constant 0 : index
    %111 = vector.load %arg5[%c0_36, %c0_37, %c0_38] : memref<1x128x128xbf16, #tpu.memory_space<vmem>>, vector<1x128x128xbf16>
    %112 = vector.shape_cast %111 : vector<1x128x128xbf16> to vector<128x128xbf16>
    %cst_39 = arith.constant dense<0.000000e+00> : vector<16x128xf32>
    %113 = tpu.matmul %110, %112, %cst_39 {dimension_numbers = #tpu.dot_dimension_numbers<[1], [0], [0], [1], [0, 0, 1, 1], [], []>} : vector<16x128xbf16>, vector<128x128xbf16>, vector<16x128xf32> -> vector<16x128xf32>
    %114 = arith.addf %4, %113 : vector<16x128xf32>
    %115 = vector.broadcast %9 : vector<1x128xf32> to vector<16x128xf32>
    %116 = arith.addf %114, %115 : vector<16x128xf32>
    %cst_40 = arith.constant dense<0.000000e+00> : vector<16xf32>
    %117 = vector.multi_reduction <add>, %116, %cst_40 [1] : vector<16x128xf32> to vector<16xf32>
    %118 = vector.shape_cast %117 : vector<16xf32> to vector<16x1xf32>
    %cst_41 = arith.constant 1.280000e+02 : f32
    %119 = vector.broadcast %cst_41 : f32 to vector<16x1xf32>
    %120 = arith.divf %118, %119 : vector<16x1xf32>
    %121 = vector.broadcast %120 : vector<16x1xf32> to vector<16x128xf32>
    %122 = arith.subf %116, %121 : vector<16x128xf32>
    %123 = arith.mulf %122, %122 : vector<16x128xf32>
    %cst_42 = arith.constant dense<0.000000e+00> : vector<16xf32>
    %124 = vector.multi_reduction <add>, %123, %cst_42 [1] : vector<16x128xf32> to vector<16xf32>
    %125 = vector.shape_cast %124 : vector<16xf32> to vector<16x1xf32>
    %cst_43 = arith.constant 1.280000e+02 : f32
    %126 = vector.broadcast %cst_43 : f32 to vector<16x1xf32>
    %127 = arith.divf %125, %126 : vector<16x1xf32>
    %128 = vector.broadcast %120 : vector<16x1xf32> to vector<16x128xf32>
    %129 = arith.subf %116, %128 : vector<16x128xf32>
    %cst_44 = arith.constant 9.99999997E-7 : f32
    %130 = vector.broadcast %cst_44 : f32 to vector<16x1xf32>
    %131 = arith.addf %127, %130 : vector<16x1xf32>
    %132 = math.rsqrt %131 : vector<16x1xf32>
    %133 = vector.broadcast %132 : vector<16x1xf32> to vector<16x128xf32>
    %134 = arith.mulf %129, %133 : vector<16x128xf32>
    %135 = vector.broadcast %10 : vector<1x128xf32> to vector<16x128xf32>
    %136 = arith.mulf %134, %135 : vector<16x128xf32>
    %137 = vector.broadcast %11 : vector<1x128xf32> to vector<16x128xf32>
    %138 = arith.addf %136, %137 : vector<16x128xf32>
    %139 = arith.truncf %138 : vector<16x128xf32> to vector<16x128xbf16>
    %c0_45 = arith.constant 0 : index
    %c0_46 = arith.constant 0 : index
    %c0_47 = arith.constant 0 : index
    %140 = vector.load %arg6[%c0_45, %c0_46, %c0_47] : memref<1x128x256xbf16, #tpu.memory_space<vmem>>, vector<1x128x256xbf16>
    %141 = vector.shape_cast %140 : vector<1x128x256xbf16> to vector<128x256xbf16>
    %cst_48 = arith.constant dense<0.000000e+00> : vector<16x256xf32>
    %142 = tpu.matmul %139, %141, %cst_48 {dimension_numbers = #tpu.dot_dimension_numbers<[1], [0], [0], [1], [0, 0, 1, 1], [], []>} : vector<16x128xbf16>, vector<128x256xbf16>, vector<16x256xf32> -> vector<16x256xf32>
    %c0_49 = arith.constant 0 : index
    %c0_50 = arith.constant 0 : index
    %c0_51 = arith.constant 0 : index
    %143 = vector.load %arg10[%c0_49, %c0_50, %c0_51] : memref<1x1x256xf32, #tpu.memory_space<vmem>>, vector<1x1x256xf32>
    %144 = vector.shape_cast %143 : vector<1x1x256xf32> to vector<1x256xf32>
    %145 = vector.broadcast %144 : vector<1x256xf32> to vector<16x256xf32>
    %146 = arith.addf %142, %145 : vector<16x256xf32>
    %cst_52 = arith.constant 5.000000e-01 : f32
    %147 = vector.broadcast %cst_52 : f32 to vector<16x256xf32>
    %148 = arith.mulf %147, %146 : vector<16x256xf32>
    %cst_53 = arith.constant 4.471500e-02 : f32
    %149 = vector.broadcast %cst_53 : f32 to vector<16x256xf32>
    %150 = arith.mulf %149, %146 : vector<16x256xf32>
    %151 = arith.mulf %150, %146 : vector<16x256xf32>
    %152 = arith.mulf %151, %146 : vector<16x256xf32>
    %153 = arith.addf %146, %152 : vector<16x256xf32>
    %cst_54 = arith.constant 0.797884583 : f32
    %154 = vector.broadcast %cst_54 : f32 to vector<16x256xf32>
    %155 = arith.mulf %154, %153 : vector<16x256xf32>
    %156 = math.tanh %155 : vector<16x256xf32>
    %cst_55 = arith.constant 1.000000e+00 : f32
    %157 = vector.broadcast %cst_55 : f32 to vector<16x256xf32>
    %158 = arith.addf %157, %156 : vector<16x256xf32>
    %159 = arith.mulf %148, %158 : vector<16x256xf32>
    %160 = arith.truncf %159 : vector<16x256xf32> to vector<16x256xbf16>
    %c0_56 = arith.constant 0 : index
    %c0_57 = arith.constant 0 : index
    %c0_58 = arith.constant 0 : index
    %161 = vector.load %arg7[%c0_56, %c0_57, %c0_58] : memref<1x256x128xbf16, #tpu.memory_space<vmem>>, vector<1x256x128xbf16>
    %162 = vector.shape_cast %161 : vector<1x256x128xbf16> to vector<256x128xbf16>
    %cst_59 = arith.constant dense<0.000000e+00> : vector<16x128xf32>
    %163 = tpu.matmul %160, %162, %cst_59 {dimension_numbers = #tpu.dot_dimension_numbers<[1], [0], [0], [1], [0, 0, 1, 1], [], []>} : vector<16x256xbf16>, vector<256x128xbf16>, vector<16x128xf32> -> vector<16x128xf32>
    %164 = arith.addf %116, %163 : vector<16x128xf32>
    %165 = vector.broadcast %12 : vector<1x128xf32> to vector<16x128xf32>
    %166 = arith.addf %164, %165 : vector<16x128xf32>
    %c0_60 = arith.constant 0 : index
    %c0_61 = arith.constant 0 : index
    %167 = vector.load %arg11[%c0_60, %c0_61] : memref<16x128xf32, #tpu.memory_space<vmem>>, vector<16x128xf32>
    tpu.vector_store %arg11[%c0_60, %c0_61], %166 {strides = array<i32>} : memref<16x128xf32, #tpu.memory_space<vmem>>, vector<16x128xf32>,
    return
  }
  func.func @transform_0(%arg0: i32) -> (i32, i32) {
    %c0_i32 = arith.constant 0 : i32
    %c0_i32_0 = arith.constant 0 : i32
    return %arg0, %c0_i32 : i32, i32
  }
  func.func @transform_1(%arg0: i32) -> (i32, i32) {
    %c0_i32 = arith.constant 0 : i32
    %c0_i32_0 = arith.constant 0 : i32
    %c0_i32_1 = arith.constant 0 : i32
    return %c0_i32, %c0_i32_0 : i32, i32
  }
  func.func @transform_2(%arg0: i32) -> (i32, i32) {
    %c0_i32 = arith.constant 0 : i32
    %c0_i32_0 = arith.constant 0 : i32
    %c0_i32_1 = arith.constant 0 : i32
    return %c0_i32, %c0_i32_0 : i32, i32
  }
  func.func @transform_3(%arg0: i32) -> (i32, i32, i32) {
    %c0_i32 = arith.constant 0 : i32
    %c0_i32_0 = arith.constant 0 : i32
    %c0_i32_1 = arith.constant 0 : i32
    %c0_i32_2 = arith.constant 0 : i32
    return %c0_i32, %c0_i32_0, %c0_i32_1 : i32, i32, i32
  }
  func.func @transform_4(%arg0: i32) -> (i32, i32, i32) {
    %c0_i32 = arith.constant 0 : i32
    %c0_i32_0 = arith.constant 0 : i32
    %c0_i32_1 = arith.constant 0 : i32
    %c0_i32_2 = arith.constant 0 : i32
    return %c0_i32, %c0_i32_0, %c0_i32_1 : i32, i32, i32
  }
  func.func @transform_5(%arg0: i32) -> (i32, i32, i32) {
    %c0_i32 = arith.constant 0 : i32
    %c0_i32_0 = arith.constant 0 : i32
    %c0_i32_1 = arith.constant 0 : i32
    %c0_i32_2 = arith.constant 0 : i32
    return %c0_i32, %c0_i32_0, %c0_i32_1 : i32, i32, i32
  }
  func.func @transform_6(%arg0: i32) -> (i32, i32, i32) {
    %c0_i32 = arith.constant 0 : i32
    %c0_i32_0 = arith.constant 0 : i32
    %c0_i32_1 = arith.constant 0 : i32
    %c0_i32_2 = arith.constant 0 : i32
    return %c0_i32, %c0_i32_0, %c0_i32_1 : i32, i32, i32
  }
  func.func @transform_7(%arg0: i32) -> (i32, i32, i32) {
    %c0_i32 = arith.constant 0 : i32
    %c0_i32_0 = arith.constant 0 : i32
    %c0_i32_1 = arith.constant 0 : i32
    %c0_i32_2 = arith.constant 0 : i32
    return %c0_i32, %c0_i32_0, %c0_i32_1 : i32, i32, i32
  }
  func.func @transform_8(%arg0: i32) -> (i32, i32, i32) {
    %c0_i32 = arith.constant 0 : i32
    %c0_i32_0 = arith.constant 0 : i32
    %c0_i32_1 = arith.constant 0 : i32
    %c0_i32_2 = arith.constant 0 : i32
    return %c0_i32, %c0_i32_0, %c0_i32_1 : i32, i32, i32
  }
  func.func @transform_9(%arg0: i32) -> (i32, i32, i32) {
    %c0_i32 = arith.constant 0 : i32
    %c0_i32_0 = arith.constant 0 : i32
    %c0_i32_1 = arith.constant 0 : i32
    %c0_i32_2 = arith.constant 0 : i32
    return %c0_i32, %c0_i32_0, %c0_i32_1 : i32, i32, i32
  }
  func.func @transform_10(%arg0: i32) -> (i32, i32) {
    %c0_i32 = arith.constant 0 : i32
    %c0_i32_0 = arith.constant 0 : i32
    return %arg0, %c0_i32 : i32, i32
  }
}

</mosaic_0001>

<llo_original>
// kernel: vision_tower_dynamic_s2_forward.1
$region0: #{vision_tower_dynamic_s2_forward.1}
  #allocation0 [shape = 'u32[]', space=smem, size = 0x4, offset = 0x4, fixed_abs, tag = 'smem constant byte address 0x4 - core index']
  #allocation1 [shape = 'u32[144,128]{1,0:T(1,128)}', space=vmem, size = 0x12000, scoped, tag = 'internal scratch']
  %s0 = inlined_call_operand.vmem [shape: bf16[32,192], index: 0, kind: input, shape index: {}]
  %s1 = inlined_call_operand.vmem [shape: bf16[192,128], index: 1, kind: input, shape index: {}]
  %s2 = inlined_call_operand.vmem [shape: f32[16,128], index: 2, kind: input, shape index: {}]
  %s3 = inlined_call_operand.vmem [shape: bf16[1,128,384], index: 3, kind: input, shape index: {}]
  %s4 = inlined_call_operand.vmem [shape: bf16[1,128,128], index: 4, kind: input, shape index: {}]
  %s5 = inlined_call_operand.vmem [shape: bf16[1,128,256], index: 5, kind: input, shape index: {}]
  %s6 = inlined_call_operand.vmem [shape: bf16[1,256,128], index: 6, kind: input, shape index: {}]
  %s7 = inlined_call_operand.vmem [shape: f32[1,8,128], index: 7, kind: input, shape index: {}]
  %s8 = inlined_call_operand.vmem [shape: f32[1,1,384], index: 8, kind: input, shape index: {}]
  %s9 = inlined_call_operand.vmem [shape: f32[1,1,256], index: 9, kind: input, shape index: {}]
  %s10 = inlined_call_operand.vmem [shape: f32[32,128], index: 10, kind: output, shape index: {}]
  %s11 = sld [smem:[#allocation0]]
  $region73: #{vision_tower_dynamic_s2_forward.1} parent=0
    _
  %s13 = ssub.s32 1, %s11
  %s14 = scalar_select 0, %s13, %s11
  loop: start=0, step=1, limit=4
  $region2: #{vision_tower_dynamic_s2_forward.1} parent=0 // loop_pre_header
    _
  $region3: #{vision_tower_dynamic_s2_forward.1} parent=0 // loop_header
    %s16 = sphi 0, %s20
    %p17 = scmp.ge.s32.totalorder %s16, 4
    %s26 = sphi 0, %s28
    %s29 = sphi 0, %s26
    %s30 = sphi 0, %s29
    %s46 = sphi 0, %s30
    %s50 = sphi 0, %s50
    %s52 = sphi 0, %s50
    %s53 = sphi 0, %s52
    %s67 = sphi 0, %s53
    %s71 = sphi 0, %s71
    %s73 = sphi 0, %s71
    %s74 = sphi 0, %s73
    %s88 = sphi 0, %s74
    %s92 = sphi 0, %s92
    %s94 = sphi 0, %s92
    %s95 = sphi 0, %s94
    %s109 = sphi 0, %s95
    %s113 = sphi 0, %s113
    %s115 = sphi 0, %s113
    %s116 = sphi 0, %s115
    %s130 = sphi 0, %s116
    %s134 = sphi 0, %s134
    %s136 = sphi 0, %s134
    %s137 = sphi 0, %s136
    %s151 = sphi 0, %s137
    %s155 = sphi 0, %s155
    %s157 = sphi 0, %s155
    %s158 = sphi 0, %s157
    %s172 = sphi 0, %s158
    %s176 = sphi 0, %s176
    %s178 = sphi 0, %s176
    %s179 = sphi 0, %s178
    %s193 = sphi 0, %s179
    %s197 = sphi 0, %s197
    %s199 = sphi 0, %s197
    %s200 = sphi 0, %s199
    %s214 = sphi 0, %s200
    %s218 = sphi 0, %s218
    %s220 = sphi 0, %s218
    %s221 = sphi 0, %s220
    %s235 = sphi 0, %s221
    %s241 = sphi 0, %s243
    %s244 = sphi 0, %s241
    %s245 = sphi 0, %s244
    %s261 = sphi 0, %s245
  $region4: #{vision_tower_dynamic_s2_forward.1} parent=0 // loop_header_branch
    %19 = sbr.rel (%p17) target = $region8
  $region5: #{vision_tower_dynamic_s2_forward.1} parent=0 // loop_body
    %s21 = ssub.s32 %s16, 1
    %s22 = ssub.s32 %s16, 2
    %s23 = sadd.s32 %s16, 1
    %s24 = ssub.s32 %s16, %s23
    %p25 = scmp.eq.s32.totalorder %s24, 0
    %s27 = sadd.s32 %s26, 1
    %s28 = scalar_select %p25, %s26, %s27
    %p31 = pneg %p25
    %p32 = scmp.eq.s32.totalorder %s16, 1
    %p33 = por %p31, %p32
    %p34 = scmp.ne.s32.totalorder %s26, %s29
    %p35 = scmp.eq.s32.totalorder %s16, 0
    %p36 = por %p34, %p35
    %p37 = scmp.ne.s32.totalorder %s26, %s29
    %p38 = scmp.eq.s32.totalorder %s21, 1
    %p39 = por %p37, %p38
    %p40 = scmp.ne.s32.totalorder %s29, %s30
    %p41 = scmp.eq.s32.totalorder %s21, 0
    %p42 = por %p40, %p41
    %p43 = scmp.ne.s32.totalorder %s29, %s30
    %p44 = scmp.eq.s32.totalorder %s22, 1
    %p45 = por %p43, %p44
    %p47 = scmp.ne.s32.totalorder %s30, %s46
    %p48 = scmp.eq.s32.totalorder %s22, 0
    %p49 = por %p47, %p48
    %s51 = sadd.s32 %s50, 1
    %p54 = scmp.eq.s32.totalorder %s16, 1
    %p55 = scmp.ne.s32.totalorder %s50, %s52
    %p56 = scmp.eq.s32.totalorder %s16, 0
    %p57 = por %p55, %p56
    %p58 = scmp.ne.s32.totalorder %s50, %s52
    %p59 = scmp.eq.s32.totalorder %s21, 1
    %p60 = por %p58, %p59
    %p61 = scmp.ne.s32.totalorder %s52, %s53
    %p62 = scmp.eq.s32.totalorder %s21, 0
    %p63 = por %p61, %p62
    %p64 = scmp.ne.s32.totalorder %s52, %s53
    %p65 = scmp.eq.s32.totalorder %s22, 1
    %p66 = por %p64, %p65
    %p68 = scmp.ne.s32.totalorder %s53, %s67
    %p69 = scmp.eq.s32.totalorder %s22, 0
    %p70 = por %p68, %p69
    %s72 = sadd.s32 %s71, 1
    %p75 = scmp.eq.s32.totalorder %s16, 1
    %p76 = scmp.ne.s32.totalorder %s71, %s73
    %p77 = scmp.eq.s32.totalorder %s16, 0
    %p78 = por %p76, %p77
    %p79 = scmp.ne.s32.totalorder %s71, %s73
    %p80 = scmp.eq.s32.totalorder %s21, 1
    %p81 = por %p79, %p80
    %p82 = scmp.ne.s32.totalorder %s73, %s74
    %p83 = scmp.eq.s32.totalorder %s21, 0
    %p84 = por %p82, %p83
    %p85 = scmp.ne.s32.totalorder %s73, %s74
    %p86 = scmp.eq.s32.totalorder %s22, 1
    %p87 = por %p85, %p86
    %p89 = scmp.ne.s32.totalorder %s74, %s88
    %p90 = scmp.eq.s32.totalorder %s22, 0
    %p91 = por %p89, %p90
    %s93 = sadd.s32 %s92, 1
    %p96 = scmp.eq.s32.totalorder %s16, 1
    %p97 = scmp.ne.s32.totalorder %s92, %s94
    %p98 = scmp.eq.s32.totalorder %s16, 0
    %p99 = por %p97, %p98
    %p100 = scmp.ne.s32.totalorder %s92, %s94
    %p101 = scmp.eq.s32.totalorder %s21, 1
    %p102 = por %p100, %p101
    %p103 = scmp.ne.s32.totalorder %s94, %s95
    %p104 = scmp.eq.s32.totalorder %s21, 0
    %p105 = por %p103, %p104
    %p106 = scmp.ne.s32.totalorder %s94, %s95
    %p107 = scmp.eq.s32.totalorder %s22, 1
    %p108 = por %p106, %p107
    %p110 = scmp.ne.s32.totalorder %s95, %s109
    %p111 = scmp.eq.s32.totalorder %s22, 0
    %p112 = por %p110, %p111
    %s114 = sadd.s32 %s113, 1
    %p117 = scmp.eq.s32.totalorder %s16, 1
    %p118 = scmp.ne.s32.totalorder %s113, %s115
    %p119 = scmp.eq.s32.totalorder %s16, 0
    %p120 = por %p118, %p119
    %p121 = scmp.ne.s32.totalorder %s113, %s115
    %p122 = scmp.eq.s32.totalorder %s21, 1
    %p123 = por %p121, %p122
    %p124 = scmp.ne.s32.totalorder %s115, %s116
    %p125 = scmp.eq.s32.totalorder %s21, 0
    %p126 = por %p124, %p125
    %p127 = scmp.ne.s32.totalorder %s115, %s116
    %p128 = scmp.eq.s32.totalorder %s22, 1
    %p129 = por %p127, %p128
    %p131 = scmp.ne.s32.totalorder %s116, %s130
    %p132 = scmp.eq.s32.totalorder %s22, 0
    %p133 = por %p131, %p132
    %s135 = sadd.s32 %s134, 1
    %p138 = scmp.eq.s32.totalorder %s16, 1
    %p139 = scmp.ne.s32.totalorder %s134, %s136
    %p140 = scmp.eq.s32.totalorder %s16, 0
    %p141 = por %p139, %p140
    %p142 = scmp.ne.s32.totalorder %s134, %s136
    %p143 = scmp.eq.s32.totalorder %s21, 1
    %p144 = por %p142, %p143
    %p145 = scmp.ne.s32.totalorder %s136, %s137
    %p146 = scmp.eq.s32.totalorder %s21, 0
    %p147 = por %p145, %p146
    %p148 = scmp.ne.s32.totalorder %s136, %s137
    %p149 = scmp.eq.s32.totalorder %s22, 1
    %p150 = por %p148, %p149
    %p152 = scmp.ne.s32.totalorder %s137, %s151
    %p153 = scmp.eq.s32.totalorder %s22, 0
    %p154 = por %p152, %p153
    %s156 = sadd.s32 %s155, 1
    %p159 = scmp.eq.s32.totalorder %s16, 1
    %p160 = scmp.ne.s32.totalorder %s155, %s157
    %p161 = scmp.eq.s32.totalorder %s16, 0
    %p162 = por %p160, %p161
    %p163 = scmp.ne.s32.totalorder %s155, %s157
    %p164 = scmp.eq.s32.totalorder %s21, 1
    %p165 = por %p163, %p164
    %p166 = scmp.ne.s32.totalorder %s157, %s158
    %p167 = scmp.eq.s32.totalorder %s21, 0
    %p168 = por %p166, %p167
    %p169 = scmp.ne.s32.totalorder %s157, %s158
    %p170 = scmp.eq.s32.totalorder %s22, 1
    %p171 = por %p169, %p170
    %p173 = scmp.ne.s32.totalorder %s158, %s172
    %p174 = scmp.eq.s32.totalorder %s22, 0
    %p175 = por %p173, %p174
    %s177 = sadd.s32 %s176, 1
    %p180 = scmp.eq.s32.totalorder %s16, 1
    %p181 = scmp.ne.s32.totalorder %s176, %s178
    %p182 = scmp.eq.s32.totalorder %s16, 0
    %p183 = por %p181, %p182
    %p184 = scmp.ne.s32.totalorder %s176, %s178
    %p185 = scmp.eq.s32.totalorder %s21, 1
    %p186 = por %p184, %p185
    %p187 = scmp.ne.s32.totalorder %s178, %s179
    %p188 = scmp.eq.s32.totalorder %s21, 0
    %p189 = por %p187, %p188
    %p190 = scmp.ne.s32.totalorder %s178, %s179
    %p191 = scmp.eq.s32.totalorder %s22, 1
    %p192 = por %p190, %p191
    %p194 = scmp.ne.s32.totalorder %s179, %s193
    %p195 = scmp.eq.s32.totalorder %s22, 0
    %p196 = por %p194, %p195
    %s198 = sadd.s32 %s197, 1
    %p201 = scmp.eq.s32.totalorder %s16, 1
    %p202 = scmp.ne.s32.totalorder %s197, %s199
    %p203 = scmp.eq.s32.totalorder %s16, 0
    %p204 = por %p202, %p203
    %p205 = scmp.ne.s32.totalorder %s197, %s199
    %p206 = scmp.eq.s32.totalorder %s21, 1
    %p207 = por %p205, %p206
    %p208 = scmp.ne.s32.totalorder %s199, %s200
    %p209 = scmp.eq.s32.totalorder %s21, 0
    %p210 = por %p208, %p209
    %p211 = scmp.ne.s32.totalorder %s199, %s200
    %p212 = scmp.eq.s32.totalorder %s22, 1
    %p213 = por %p211, %p212
    %p215 = scmp.ne.s32.totalorder %s200, %s214
    %p216 = scmp.eq.s32.totalorder %s22, 0
    %p217 = por %p215, %p216
    %s219 = sadd.s32 %s218, 1
    %p222 = scmp.eq.s32.totalorder %s16, 1
    %p223 = scmp.ne.s32.totalorder %s218, %s220
    %p224 = scmp.eq.s32.totalorder %s16, 0
    %p225 = por %p223, %p224
    %p226 = scmp.ne.s32.totalorder %s218, %s220
    %p227 = scmp.eq.s32.totalorder %s21, 1
    %p228 = por %p226, %p227
    %p229 = scmp.ne.s32.totalorder %s220, %s221
    %p230 = scmp.eq.s32.totalorder %s21, 0
    %p231 = por %p229, %p230
    %p232 = scmp.ne.s32.totalorder %s220, %s221
    %p233 = scmp.eq.s32.totalorder %s22, 1
    %p234 = por %p232, %p233
    %p236 = scmp.ne.s32.totalorder %s221, %s235
    %p237 = scmp.eq.s32.totalorder %s22, 0
    %p238 = por %p236, %p237
    %s239 = ssub.s32 %s16, %s23
    %p240 = scmp.eq.s32.totalorder %s239, 0
    %s242 = sadd.s32 %s241, 1
    %s243 = scalar_select %p240, %s241, %s242
    %p246 = pneg %p240
    %p247 = scmp.eq.s32.totalorder %s16, 1
    %p248 = por %p246, %p247
    %p249 = scmp.ne.s32.totalorder %s241, %s244
    %p250 = scmp.eq.s32.totalorder %s16, 0
    %p251 = por %p249, %p250
    %p252 = scmp.ne.s32.totalorder %s241, %s244
    %p253 = scmp.eq.s32.totalorder %s21, 1
    %p254 = por %p252, %p253
    %p255 = scmp.ne.s32.totalorder %s244, %s245
    %p256 = scmp.eq.s32.totalorder %s21, 0
    %p257 = por %p255, %p256
    %p258 = scmp.ne.s32.totalorder %s244, %s245
    %p259 = scmp.eq.s32.totalorder %s22, 1
    %p260 = por %p258, %p259
    %p262 = scmp.ne.s32.totalorder %s245, %s261
    %p263 = scmp.eq.s32.totalorder %s22, 0
    %p264 = por %p262, %p263
    %p265 = scmp.le.s32.totalorder 1, %s16
    %p266 = scmp.lt.s32.totalorder %s16, 3
    %p267 = pnand %p265, %p266
    %p268 = pneg %p267
    // Predicated region
    $region9: #{vision_tower_dynamic_s2_forward.1} parent=5 // pred_check
      _
    $region10: #{vision_tower_dynamic_s2_forward.1} parent=5 // pred_check_branch
      %270 = sbr.rel (%p267) target = $region12
    $region11: #{vision_tower_dynamic_s2_forward.1} parent=5 // pred_region
      %s271 = ssub.s32 %s16, 1
      // Predicated region
      $region13: #{vision_tower_dynamic_s2_forward.1} parent=11 // pred_check
        %p272 = pneg %p63
      $region14: #{vision_tower_dynamic_s2_forward.1} parent=11 // pred_check_branch
        %274 = sbr.rel (%p272) target = $region16
      $region15: #{vision_tower_dynamic_s2_forward.1} parent=11 // pred_region
        _
      $region16: #{vision_tower_dynamic_s2_forward.1} parent=11 // pred_fallthru
        _
      // Predicated region
      $region17: #{vision_tower_dynamic_s2_forward.1} parent=11 // pred_check
        %p275 = pneg %p84
      $region18: #{vision_tower_dynamic_s2_forward.1} parent=11 // pred_check_branch
        %277 = sbr.rel (%p275) target = $region20
      $region19: #{vision_tower_dynamic_s2_forward.1} parent=11 // pred_region
        _
      $region20: #{vision_tower_dynamic_s2_forward.1} parent=11 // pred_fallthru
        _
      // Predicated region
      $region21: #{vision_tower_dynamic_s2_forward.1} parent=11 // pred_check
        %p278 = pneg %p105
      $region22: #{vision_tower_dynamic_s2_forward.1} parent=11 // pred_check_branch
        %280 = sbr.rel (%p278) target = $region24
      $region23: #{vision_tower_dynamic_s2_forward.1} parent=11 // pred_region
        _
      $region24: #{vision_tower_dynamic_s2_forward.1} parent=11 // pred_fallthru
        _
      // Predicated region
      $region25: #{vision_tower_dynamic_s2_forward.1} parent=11 // pred_check
        %p281 = pneg %p126
      $region26: #{vision_tower_dynamic_s2_forward.1} parent=11 // pred_check_branch
        %283 = sbr.rel (%p281) target = $region28
      $region27: #{vision_tower_dynamic_s2_forward.1} parent=11 // pred_region
        _
      $region28: #{vision_tower_dynamic_s2_forward.1} parent=11 // pred_fallthru
        _
      // Predicated region
      $region29: #{vision_tower_dynamic_s2_forward.1} parent=11 // pred_check
        %p284 = pneg %p147
      $region30: #{vision_tower_dynamic_s2_forward.1} parent=11 // pred_check_branch
        %286 = sbr.rel (%p284) target = $region32
      $region31: #{vision_tower_dynamic_s2_forward.1} parent=11 // pred_region
        _
      $region32: #{vision_tower_dynamic_s2_forward.1} parent=11 // pred_fallthru
        _
      // Predicated region
      $region33: #{vision_tower_dynamic_s2_forward.1} parent=11 // pred_check
        %p287 = pneg %p168
      $region34: #{vision_tower_dynamic_s2_forward.1} parent=11 // pred_check_branch
        %289 = sbr.rel (%p287) target = $region36
      $region35: #{vision_tower_dynamic_s2_forward.1} parent=11 // pred_region
        _
      $region36: #{vision_tower_dynamic_s2_forward.1} parent=11 // pred_fallthru
        _
      // Predicated region
      $region37: #{vision_tower_dynamic_s2_forward.1} parent=11 // pred_check
        %p290 = pneg %p189
      $region38: #{vision_tower_dynamic_s2_forward.1} parent=11 // pred_check_branch
        %292 = sbr.rel (%p290) target = $region40
      $region39: #{vision_tower_dynamic_s2_forward.1} parent=11 // pred_region
        _
      $region40: #{vision_tower_dynamic_s2_forward.1} parent=11 // pred_fallthru
        _
      // Predicated region
      $region41: #{vision_tower_dynamic_s2_forward.1} parent=11 // pred_check
        %p293 = pneg %p210
      $region42: #{vision_tower_dynamic_s2_forward.1} parent=11 // pred_check_branch
        %295 = sbr.rel (%p293) target = $region44
      $region43: #{vision_tower_dynamic_s2_forward.1} parent=11 // pred_region
        _
      $region44: #{vision_tower_dynamic_s2_forward.1} parent=11 // pred_fallthru
        _
      // Predicated region
      $region45: #{vision_tower_dynamic_s2_forward.1} parent=11 // pred_check
        %p296 = pneg %p231
      $region46: #{vision_tower_dynamic_s2_forward.1} parent=11 // pred_check_branch
        %298 = sbr.rel (%p296) target = $region48
      $region47: #{vision_tower_dynamic_s2_forward.1} parent=11 // pred_region
        _
      $region48: #{vision_tower_dynamic_s2_forward.1} parent=11 // pred_fallthru
        _
    $region12: #{vision_tower_dynamic_s2_forward.1} parent=5 // pred_fallthru
      _
    %p299 = scmp.lt.s32.totalorder %s16, 2
    // Predicated region
    $region49: #{vision_tower_dynamic_s2_forward.1} parent=5 // pred_check
      %p300 = pneg %p299
    $region50: #{vision_tower_dynamic_s2_forward.1} parent=5 // pred_check_branch
      %302 = sbr.rel (%p300) target = $region52
    $region51: #{vision_tower_dynamic_s2_forward.1} parent=5 // pred_region
      // Predicated region
      $region53: #{vision_tower_dynamic_s2_forward.1} parent=51 // pred_check
        %p303 = pneg %p36
      $region54: #{vision_tower_dynamic_s2_forward.1} parent=51 // pred_check_branch
        %305 = sbr.rel (%p303) target = $region56
      $region55: #{vision_tower_dynamic_s2_forward.1} parent=51 // pred_region
        %s306 = smul.u32 2, %s16
        %p307 = scmp.lt.s32.totalorder %s306, 3
        %s308 = scalar_select %p307, %s306, 3
        %s309 = smul.addr %s308, 2
        %s310 = smul.addr %s309, 4
        %s311 = scalar_lea.vmem %s0, %s310
        %s312 = smul.u32 2, %s16
      $region56: #{vision_tower_dynamic_s2_forward.1} parent=51 // pred_fallthru
        _
    $region52: #{vision_tower_dynamic_s2_forward.1} parent=5 // pred_fallthru
      _
    %p313 = scmp.le.s32.totalorder 1, %s16
    %p314 = scmp.lt.s32.totalorder %s16, 3
    %p315 = pnand %p313, %p314
    %p316 = pneg %p315
    // Predicated region
    $region57: #{vision_tower_dynamic_s2_forward.1} parent=5 // pred_check
      _
    $region58: #{vision_tower_dynamic_s2_forward.1} parent=5 // pred_check_branch
      %318 = sbr.rel (%p315) target = $region60
    $region59: #{vision_tower_dynamic_s2_forward.1} parent=5 // pred_region
      %s319 = ssub.s32 %s16, 1
      %s320 = smul.u32 2, %s21
      %p321 = scmp.lt.s32.totalorder %s320, 3
      %s322 = scalar_select %p321, %s320, 3
      %s323 = smul.addr %s322, 2
      %s324 = smul.addr %s323, 4
      %s325 = scalar_lea.vmem %s0, %s324
      %p326 = pneg %p42
      %p327 = pneg %p39
      %p328 = pneg %p63
      %p329 = pneg %p60
      %p330 = pneg %p84
      %p331 = pneg %p81
      %p332 = pneg %p105
      %p333 = pneg %p102
      %p334 = pneg %p126
      %p335 = pneg %p123
      %p336 = pneg %p147
      %p337 = pneg %p144
      %p338 = pneg %p168
      %p339 = pneg %p165
      %p340 = pneg %p189
      %p341 = pneg %p186
      %p342 = pneg %p210
      %p343 = pneg %p207
      %p344 = pneg %p231
      %p345 = pneg %p228
      %p346 = pneg %p257
      %p347 = pneg %p254
      %s348 = smul.u32 2, %s21
      %p349 = scmp.lt.s32.totalorder %s348, 3
      %s350 = scalar_select %p349, %s348, 3
      %s351 = smul.addr %s350, 8
      %s352 = scalar_lea.vmem %s10, %s351
      %s353 = smul.u32 2, %s21
      %p354 = scmp.lt.s32.totalorder %s353, 3
      %s355 = scalar_select %p354, %s353, 3
      %s356 = smul.addr %s355, 2
      %s357 = smul.addr %s356, 4
      %s358 = scalar_lea.vmem %s0, %s357
      %s359 = smul.u32 2, %s21
      %s360 = smul.u32 2, %s21
      %p361 = scmp.lt.s32.totalorder %s360, 3
      %s362 = scalar_select %p361, %s360, 3
      %s363 = smul.addr %s362, 8
      %s364 = scalar_lea.vmem %s10, %s363
      %s365 = smul.u32 2, %s21
      %v367 = vld [vmem:[%s358] sm:$0xff]
      %v368 = vld [vmem:[%s358 + $0x8] sm:$0xff]
      %v369 = vld [vmem:[%s1] sm:$0xf]
      %v370 = vld [vmem:[%s1 + $0x4] sm:$0xf]
      %v371 = vld [vmem:[%s1 + $0x8] sm:$0xf]
      %v372 = vld [vmem:[%s1 + $0xc] sm:$0xf]
      %v373 = vld [vmem:[%s1 + $0x10] sm:$0xf]
      %v374 = vld [vmem:[%s1 + $0x14] sm:$0xf]
      %v375 = vld [vmem:[%s1 + $0x18] sm:$0xf]
      %v376 = vld [vmem:[%s1 + $0x1c] sm:$0xf]
      %v377 = vld [vmem:[%s1 + $0x20] sm:$0xf]
      %v378 = vld [vmem:[%s1 + $0x24] sm:$0xf]
      %v379 = vld [vmem:[%s1 + $0x28] sm:$0xf]
      %v380 = vld [vmem:[%s1 + $0x2c] sm:$0xf]
      %v381 = vld [vmem:[%s1 + $0x30] sm:$0xf]
      %v382 = vld [vmem:[%s1 + $0x34] sm:$0xf]
      %v383 = vld [vmem:[%s1 + $0x38] sm:$0xf]
      %v384 = vld [vmem:[%s1 + $0x3c] sm:$0xf]
      %v385 = vld [vmem:[%s1 + $0x40] sm:$0xf]
      %v386 = vld [vmem:[%s1 + $0x44] sm:$0xf]
      %v387 = vld [vmem:[%s1 + $0x48] sm:$0xf]
      %v388 = vld [vmem:[%s1 + $0x4c] sm:$0xf]
      %v389 = vld [vmem:[%s1 + $0x50] sm:$0xf]
      %v390 = vld [vmem:[%s1 + $0x54] sm:$0xf]
      %v391 = vld [vmem:[%s1 + $0x58] sm:$0xf]
      %v392 = vld [vmem:[%s1 + $0x5c] sm:$0xf]
      %v393 = vld [vmem:[%s2] sm:$0xff]
      %v394 = vld [vmem:[%s2 + $0x8] sm:$0xff]
      %v397 = vunpack.c.l.b16 %v367
      %v398 = vunpack.c.h.b16 %v367
      %v399 = vunpack.c.l.b16 %v368
      %v400 = vunpack.c.h.b16 %v368
      %v401 = vpack.c.b16 %v399, %v397
      %v402 = vpack.c.b16 %v400, %v398
      %v428 = vunpack.c.l.b16 %v369
      %v429 = vunpack.c.l.b16 %v370
      %v430 = vunpack.c.l.b16 %v371
      %v431 = vunpack.c.l.b16 %v372
      %v432 = vunpack.c.l.b16 %v373
      %v433 = vunpack.c.l.b16 %v374
      %v434 = vunpack.c.l.b16 %v375
      %v435 = vunpack.c.l.b16 %v376
      %v436 = vunpack.c.l.b16 %v377
      %v437 = vunpack.c.l.b16 %v378
      %v438 = vunpack.c.l.b16 %v379
      %v439 = vunpack.c.l.b16 %v380
      %v440 = vunpack.c.l.b16 %v381
      %v441 = vunpack.c.l.b16 %v382
      %v442 = vunpack.c.l.b16 %v383
      %v443 = vunpack.c.l.b16 %v384
      %v444 = vunpack.c.l.b16 %v385
      %v445 = vunpack.c.l.b16 %v386
      %v446 = vunpack.c.l.b16 %v387
      %v447 = vunpack.c.l.b16 %v388
      %v448 = vunpack.c.l.b16 %v389
      %v449 = vunpack.c.l.b16 %v390
      %v450 = vunpack.c.l.b16 %v391
      %v451 = vunpack.c.l.b16 %v392
      %v452 = vpack.c.b16 %v429, %v428
      %v453 = vpack.c.b16 %v431, %v430
      %v454 = vpack.c.b16 %v433, %v432
      %v455 = vpack.c.b16 %v435, %v434
      %v456 = vpack.c.b16 %v437, %v436
      %v457 = vpack.c.b16 %v439, %v438
      %v458 = vpack.c.b16 %v441, %v440
      %v459 = vpack.c.b16 %v443, %v442
      %v460 = vpack.c.b16 %v445, %v444
      %v461 = vpack.c.b16 %v447, %v446
      %v462 = vpack.c.b16 %v449, %v448
      %v463 = vpack.c.b16 %v451, %v450
      %vm476 = vcmask 523264
      %v478 = vsel %vm476, %v402, 0
      %480 = vmatprep.subr.bf16.mxu0 0
      %481 = vmatpush1.bf16.msra.mxu0 %v452
      %482 = vmatprep.subr.bf16.mxu0 0
      %483 = vmatpush1.bf16.msra.mxu0 %v453
      %484 = vmatprep.subr.bf16.mxu0 0
      %485 = vmatpush1.bf16.msra.mxu0 %v454
      %486 = vmatprep.subr.bf16.mxu0 0
      %487 = vmatpush1.bf16.msra.mxu0 %v455
      %488 = vmatprep.subr.bf16.mxu0 0
      %489 = vmatpush1.bf16.msra.mxu0 %v456
      %490 = vmatprep.subr.bf16.mxu0 0
      %491 = vmatpush1.bf16.msra.mxu0 %v457
      %492 = vmatprep.subr.bf16.mxu0 0
      %493 = vmatpush1.bf16.msra.mxu0 %v458
      %494 = vmatprep.subr.bf16.mxu0 0
      %495 = vmatpush1.bf16.msra.mxu0 %v459
      %496 = vmatprep.subr.bf16.mxu0 0
      %497 = vmatpush1.bf16.msra.mxu0 %v460
      %498 = vmatprep.subr.bf16.mxu0 0
      %499 = vmatpush1.bf16.msra.mxu0 %v461
      %500 = vmatprep.subr.bf16.mxu0 0
      %501 = vmatpush1.bf16.msra.mxu0 %v462
      %502 = vmatprep.subr.bf16.mxu0 0
      %503 = vmatpush1.bf16.msra.mxu0 %v463
      %504 = vmatprep.subr.bf16.mxu0 0
      %505 = vmatpush1.bf16.msra.mxu0 0
      %506 = vmatprep.subr.bf16.mxu0 0
      %507 = vmatpush1.bf16.msra.mxu0 0
      %508 = vmatprep.subr.bf16.mxu0 0
      %509 = vmatpush1.bf16.msra.mxu0 0
      %510 = vmatprep.subr.bf16.mxu0 0
      %511 = vmatpush1.bf16.msra.mxu0 0
      %512 = vmatprep.mubr.bf16.mxu0 %v478
      %513 = vmatmul.mubr.bf16.gmra.mrb[0].mxu0 %v401
      %v514 = vpop.f32.mrb[0].mxu0
      %v515 = vadd.f32 %v393, %v514
      %v516 = vpop.f32.mrb[0].mxu0
      %v517 = vpop.f32.mrb[0].mxu0
      %v518 = vadd.f32 %v394, %v517
      %v519 = vpop.f32.mrb[0].mxu0
      %520 = vdwg.mxu0
      %v521 = vld [vmem:[%s7] sm:$0xff]
      %522 = vadd.xlane.f32.xlu0 %v515
      %v523 = vpop.xlane.xlu0 %522
      %524 = vadd.xlane.f32.xlu0 %v518
      %v525 = vpop.xlane.xlu0 %524
      %v526 = vrcp.pop 128.0
      %v527 = vmul.f32 %v523, %v526
      %v528 = vmul.f32 %v525, %v526
      %v529 = vsub.f32 %v515, %v527
      %v530 = vsub.f32 %v518, %v528
      %v531 = vmul.f32 %v529, %v529
      %v532 = vmul.f32 %v530, %v530
      %533 = vadd.xlane.f32.xlu0 %v531
      %v534 = vpop.xlane.xlu0 %533
      %535 = vadd.xlane.f32.xlu0 %v532
      %v536 = vpop.xlane.xlu0 %535
      %v537 = vmul.f32 %v534, %v526
      %v538 = vmul.f32 %v536, %v526
      %v539 = vadd.f32 %v537, 1e-06
      %v540 = vadd.f32 %v538, 1e-06
      %v541 = vrsqrt.pop %v539
      %v542 = vrsqrt.pop %v540
      %v543 = vmul.f32 %v529, %v541
      %v544 = vmul.f32 %v530, %v542
      %v545 = vlaneseq
      %v546 = vshrl.u32 %v545, 7
      %v547 = vsub.s32 0, %v546
      %v548 = vrot.slane %v521, %v547
      %v549 = vmul.f32 %v543, %v548
      %v550 = vmul.f32 %v544, %v548
      %v551 = vlaneseq
      %v552 = vshrl.u32 %v551, 7
      %v553 = vsub.s32 1, %v552
      %v554 = vrot.slane %v521, %v553
      %v555 = vadd.f32 %v549, %v554
      %v556 = vadd.f32 %v550, %v554
      %v557 = vpack.c.bf16 %v556, %v555
      %v558 = vld [vmem:[%s3] sm:$0xff]
      %v559 = vld [vmem:[%s3 + $0x8] sm:$0xf]
      %v560 = vld [vmem:[%s3 + $0xc] sm:$0xff]
      %v561 = vld [vmem:[%s3 + $0x14] sm:$0xf]
      %v562 = vld [vmem:[%s3 + $0x18] sm:$0xff]
      %v563 = vld [vmem:[%s3 + $0x20] sm:$0xf]
      %v564 = vld [vmem:[%s3 + $0x24] sm:$0xff]
      %v565 = vld [vmem:[%s3 + $0x2c] sm:$0xf]
      %v566 = vld [vmem:[%s3 + $0x30] sm:$0xff]
      %v567 = vld [vmem:[%s3 + $0x38] sm:$0xf]
      %v568 = vld [vmem:[%s3 + $0x3c] sm:$0xff]
      %v569 = vld [vmem:[%s3 + $0x44] sm:$0xf]
      %v570 = vld [vmem:[%s3 + $0x48] sm:$0xff]
      %v571 = vld [vmem:[%s3 + $0x50] sm:$0xf]
      %v572 = vld [vmem:[%s3 + $0x54] sm:$0xff]
      %v573 = vld [vmem:[%s3 + $0x5c] sm:$0xf]
      %v574 = vld [vmem:[%s3 + $0x60] sm:$0xff]
      %v575 = vld [vmem:[%s3 + $0x68] sm:$0xf]
      %v576 = vld [vmem:[%s3 + $0x6c] sm:$0xff]
      %v577 = vld [vmem:[%s3 + $0x74] sm:$0xf]
      %v578 = vld [vmem:[%s3 + $0x78] sm:$0xff]
      %v579 = vld [vmem:[%s3 + $0x80] sm:$0xf]
      %v580 = vld [vmem:[%s3 + $0x84] sm:$0xff]
      %v581 = vld [vmem:[%s3 + $0x8c] sm:$0xf]
      %v582 = vld [vmem:[%s3 + $0x90] sm:$0xff]
      %v583 = vld [vmem:[%s3 + $0x98] sm:$0xf]
      %v584 = vld [vmem:[%s3 + $0x9c] sm:$0xff]
      %v585 = vld [vmem:[%s3 + $0xa4] sm:$0xf]
      %v586 = vld [vmem:[%s3 + $0xa8] sm:$0xff]
      %v587 = vld [vmem:[%s3 + $0xb0] sm:$0xf]
      %v588 = vld [vmem:[%s3 + $0xb4] sm:$0xff]
      %v589 = vld [vmem:[%s3 + $0xbc] sm:$0xf]
      %v590 = vld [vmem:[%s8] sm:$0x7]
      %v592 = vlaneseq
      %v593 = vshrl.u32 %v592, 7
      %v594 = vsub.s32 0, %v593
      %v595 = vrot.slane %v590, %v594
      %v596 = vlaneseq
      %v597 = vshrl.u32 %v596, 7
      %v598 = vsub.s32 1, %v597
      %v599 = vrot.slane %v590, %v598
      %v600 = vlaneseq
      %v601 = vshrl.u32 %v600, 7
      %v602 = vsub.s32 2, %v601
      %v603 = vrot.slane %v590, %v602
      %v639 = vunpack.c.l.b16 %v558
      %v640 = vunpack.c.h.b16 %v558
      %v641 = vunpack.c.l.b16 %v559
      %v642 = vunpack.c.l.b16 %v560
      %v643 = vunpack.c.h.b16 %v560
      %v644 = vunpack.c.l.b16 %v561
      %v645 = vunpack.c.l.b16 %v562
      %v646 = vunpack.c.h.b16 %v562
      %v647 = vunpack.c.l.b16 %v563
      %v648 = vunpack.c.l.b16 %v564
      %v649 = vunpack.c.h.b16 %v564
      %v650 = vunpack.c.l.b16 %v565
      %v651 = vunpack.c.l.b16 %v566
      %v652 = vunpack.c.h.b16 %v566
      %v653 = vunpack.c.l.b16 %v567
      %v654 = vunpack.c.l.b16 %v568
      %v655 = vunpack.c.h.b16 %v568
      %v656 = vunpack.c.l.b16 %v569
      %v657 = vunpack.c.l.b16 %v570
      %v658 = vunpack.c.h.b16 %v570
      %v659 = vunpack.c.l.b16 %v571
      %v660 = vunpack.c.l.b16 %v572
      %v661 = vunpack.c.h.b16 %v572
      %v662 = vunpack.c.l.b16 %v573
      %v663 = vunpack.c.l.b16 %v574
      %v664 = vunpack.c.h.b16 %v574
      %v665 = vunpack.c.l.b16 %v575
      %v666 = vunpack.c.l.b16 %v576
      %v667 = vunpack.c.h.b16 %v576
      %v668 = vunpack.c.l.b16 %v577
      %v669 = vunpack.c.l.b16 %v578
      %v670 = vunpack.c.h.b16 %v578
      %v671 = vunpack.c.l.b16 %v579
      %v672 = vunpack.c.l.b16 %v580
      %v673 = vunpack.c.h.b16 %v580
      %v674 = vunpack.c.l.b16 %v581
      %v675 = vunpack.c.l.b16 %v582
      %v676 = vunpack.c.h.b16 %v582
      %v677 = vunpack.c.l.b16 %v583
      %v678 = vunpack.c.l.b16 %v584
      %v679 = vunpack.c.h.b16 %v584
      %v680 = vunpack.c.l.b16 %v585
      %v681 = vunpack.c.l.b16 %v586
      %v682 = vunpack.c.h.b16 %v586
      %v683 = vunpack.c.l.b16 %v587
      %v684 = vunpack.c.l.b16 %v588
      %v685 = vunpack.c.h.b16 %v588
      %v686 = vunpack.c.l.b16 %v589
      %v687 = vpack.c.b16 %v642, %v639
      %v688 = vpack.c.b16 %v643, %v640
      %v689 = vpack.c.b16 %v644, %v641
      %v690 = vpack.c.b16 %v648, %v645
      %v691 = vpack.c.b16 %v649, %v646
      %v692 = vpack.c.b16 %v650, %v647
      %v693 = vpack.c.b16 %v654, %v651
      %v694 = vpack.c.b16 %v655, %v652
      %v695 = vpack.c.b16 %v656, %v653
      %v696 = vpack.c.b16 %v660, %v657
      %v697 = vpack.c.b16 %v661, %v658
      %v698 = vpack.c.b16 %v662, %v659
      %v699 = vpack.c.b16 %v666, %v663
      %v700 = vpack.c.b16 %v667, %v664
      %v701 = vpack.c.b16 %v668, %v665
      %v702 = vpack.c.b16 %v672, %v669
      %v703 = vpack.c.b16 %v673, %v670
      %v704 = vpack.c.b16 %v674, %v671
      %v705 = vpack.c.b16 %v678, %v675
      %v706 = vpack.c.b16 %v679, %v676
      %v707 = vpack.c.b16 %v680, %v677
      %v708 = vpack.c.b16 %v684, %v681
      %v709 = vpack.c.b16 %v685, %v682
      %v710 = vpack.c.b16 %v686, %v683
      %735 = vmatprep.subr.bf16.mxu0 %v688
      %736 = vmatpush1.bf16.msra.mxu0 %v687
      %737 = vmatprep.subr.bf16.mxu0 %v691
      %738 = vmatpush1.bf16.msra.mxu0 %v690
      %739 = vmatprep.subr.bf16.mxu0 %v694
      %740 = vmatpush1.bf16.msra.mxu0 %v693
      %741 = vmatprep.subr.bf16.mxu0 %v697
      %742 = vmatpush1.bf16.msra.mxu0 %v696
      %743 = vmatprep.subr.bf16.mxu0 %v700
      %744 = vmatpush1.bf16.msra.mxu0 %v699
      %745 = vmatprep.subr.bf16.mxu0 %v703
      %746 = vmatpush1.bf16.msra.mxu0 %v702
      %747 = vmatprep.subr.bf16.mxu0 %v706
      %748 = vmatpush1.bf16.msra.mxu0 %v705
      %749 = vmatprep.subr.bf16.mxu0 %v709
      %750 = vmatpush1.bf16.msra.mxu0 %v708
      %751 = vmatprep.subr.bf16.mxu0 0
      %752 = vmatpush1.bf16.msra.mxu0 0
      %753 = vmatprep.subr.bf16.mxu0 0
      %754 = vmatpush1.bf16.msra.mxu0 0
      %755 = vmatprep.subr.bf16.mxu0 0
      %756 = vmatpush1.bf16.msra.mxu0 0
      %757 = vmatprep.subr.bf16.mxu0 0
      %758 = vmatpush1.bf16.msra.mxu0 0
      %759 = vmatprep.subr.bf16.mxu0 0
      %760 = vmatpush1.bf16.msra.mxu0 0
      %761 = vmatprep.subr.bf16.mxu0 0
      %762 = vmatpush1.bf16.msra.mxu0 0
      %763 = vmatprep.subr.bf16.mxu0 0
      %764 = vmatpush1.bf16.msra.mxu0 0
      %765 = vmatprep.subr.bf16.mxu0 0
      %766 = vmatpush1.bf16.msra.mxu0 0
      %767 = vmatprep.mubr.bf16.mxu0 0
      %768 = vmatmul.mubr.bf16.gmra.mrb[0].mxu0 %v557
      %v769 = vpop.f32.mrb[0].mxu0
      %v770 = vadd.f32 %v595, %v769
      %v771 = vpop.f32.mrb[0].mxu0
      %v772 = vadd.f32 %v599, %v771
      %v773 = vpop.f32.mrb[0].mxu0
      %v774 = vadd.f32 %v595, %v773
      %v775 = vpop.f32.mrb[0].mxu0
      %v776 = vadd.f32 %v599, %v775
      %777 = vdwg.mxu0
      %778 = vmatprep.subr.bf16.mxu0 0
      %779 = vmatpush1.bf16.msra.mxu0 %v689
      %780 = vmatprep.subr.bf16.mxu0 0
      %781 = vmatpush1.bf16.msra.mxu0 %v692
      %782 = vmatprep.subr.bf16.mxu0 0
      %783 = vmatpush1.bf16.msra.mxu0 %v695
      %784 = vmatprep.subr.bf16.mxu0 0
      %785 = vmatpush1.bf16.msra.mxu0 %v698
      %786 = vmatprep.subr.bf16.mxu0 0
      %787 = vmatpush1.bf16.msra.mxu0 %v701
      %788 = vmatprep.subr.bf16.mxu0 0
      %789 = vmatpush1.bf16.msra.mxu0 %v704
      %790 = vmatprep.subr.bf16.mxu0 0
      %791 = vmatpush1.bf16.msra.mxu0 %v707
      %792 = vmatprep.subr.bf16.mxu0 0
      %793 = vmatpush1.bf16.msra.mxu0 %v710
      %794 = vmatprep.subr.bf16.mxu0 0
      %795 = vmatpush1.bf16.msra.mxu0 0
      %796 = vmatprep.subr.bf16.mxu0 0
      %797 = vmatpush1.bf16.msra.mxu0 0
      %798 = vmatprep.subr.bf16.mxu0 0
      %799 = vmatpush1.bf16.msra.mxu0 0
      %800 = vmatprep.subr.bf16.mxu0 0
      %801 = vmatpush1.bf16.msra.mxu0 0
      %802 = vmatprep.subr.bf16.mxu0 0
      %803 = vmatpush1.bf16.msra.mxu0 0
      %804 = vmatprep.subr.bf16.mxu0 0
      %805 = vmatpush1.bf16.msra.mxu0 0
      %806 = vmatprep.subr.bf16.mxu0 0
      %807 = vmatpush1.bf16.msra.mxu0 0
      %808 = vmatprep.subr.bf16.mxu0 0
      %809 = vmatpush1.bf16.msra.mxu0 0
      %810 = vmatprep.mubr.bf16.mxu0 0
      %811 = vmatmul.mubr.bf16.gmra.mrb[0].mxu0 %v557
      %v812 = vpop.f32.mrb[0].mxu0
      %v813 = vadd.f32 %v603, %v812
      %v814 = vpop.f32.mrb[0].mxu0
      %v815 = vpop.f32.mrb[0].mxu0
      %v816 = vadd.f32 %v603, %v815
      %v817 = vpop.f32.mrb[0].mxu0
      %818 = vdwg.mxu0
      %v819 = vpack.c.bf16 %v774, %v770
      %v820 = vpack.c.bf16 %v776, %v772
      %v821 = vpack.c.bf16 %v816, %v813
      %vm822 = vcmask 261120
      %v824 = vsel %vm822, %v819, 0
      %v827 = vsel %vm822, %v820, 0
      %829 = vmatprep.subr.bf16.mxu0 0
      %830 = vmatpush1.bf16.xpose.msra.mxu0 %v827
      %831 = vmatprep.subr.bf16.mxu0 0
      %832 = vmatpush1.bf16.xpose.msra.mxu0 0
      %833 = vmatprep.subr.bf16.mxu0 0
      %834 = vmatpush1.bf16.xpose.msra.mxu0 0
      %835 = vmatprep.subr.bf16.mxu0 0
      %836 = vmatpush1.bf16.xpose.msra.mxu0 0
      %837 = vmatprep.subr.bf16.mxu0 0
      %838 = vmatpush1.bf16.xpose.msra.mxu0 0
      %839 = vmatprep.subr.bf16.mxu0 0
      %840 = vmatpush1.bf16.xpose.msra.mxu0 0
      %841 = vmatprep.subr.bf16.mxu0 0
      %842 = vmatpush1.bf16.xpose.msra.mxu0 0
      %843 = vmatprep.subr.bf16.mxu0 0
      %844 = vmatpush1.bf16.xpose.msra.mxu0 0
      %845 = vmatprep.subr.bf16.mxu0 0
      %846 = vmatpush1.bf16.xpose.msra.mxu0 0
      %847 = vmatprep.subr.bf16.mxu0 0
      %848 = vmatpush1.bf16.xpose.msra.mxu0 0
      %849 = vmatprep.subr.bf16.mxu0 0
      %850 = vmatpush1.bf16.xpose.msra.mxu0 0
      %851 = vmatprep.subr.bf16.mxu0 0
      %852 = vmatpush1.bf16.xpose.msra.mxu0 0
      %853 = vmatprep.subr.bf16.mxu0 0
      %854 = vmatpush1.bf16.xpose.msra.mxu0 0
      %855 = vmatprep.subr.bf16.mxu0 0
      %856 = vmatpush1.bf16.xpose.msra.mxu0 0
      %857 = vmatprep.subr.bf16.mxu0 0
      %858 = vmatpush1.bf16.xpose.msra.mxu0 0
      %859 = vmatprep.subr.bf16.mxu0 0
      %860 = vmatpush1.bf16.xpose.msra.mxu0 0
      %861 = vmatprep.mubr.bf16.mxu0 0
      %862 = vmatmul.mubr.bf16.gmra.mrb[0].mxu0 %v824
      %v863 = vpop.f32.mrb[0].mxu0
      %v864 = vadd.f32 0.0, %v863
      %v865 = vpop.f32.mrb[0].mxu0
      %v866 = vpop.f32.mrb[0].mxu0
      %v867 = vadd.f32 0.0, %v866
      %v868 = vpop.f32.mrb[0].mxu0
      %869 = vdwg.mxu0
      %vm870 = vcmask 130048
      %v871 = vsel %vm870, %v864, -inf
      %872 = vmax.xlane.f32.xlu0 %v871
      %v873 = vpop.xlane.xlu0 %872
      %v874 = vsel %vm870, %v867, -inf
      %875 = vmax.xlane.f32.xlu0 %v874
      %v876 = vpop.xlane.xlu0 %875
      %v877 = vsub.f32 %v864, %v873
      %v878 = vsub.f32 %v867, %v876
      %v879 = vmul.f32 %v877, 1.442695
      %v880 = vpow.pop %v879
      %v881 = vmul.f32 %v878, 1.442695
      %v882 = vpow.pop %v881
      %v883 = vsel %vm870, %v880, 0.0
      %884 = vadd.xlane.f32.xlu0 %v883
      %v885 = vpop.xlane.xlu0 %884
      %v886 = vsel %vm870, %v882, 0.0
      %887 = vadd.xlane.f32.xlu0 %v886
      %v888 = vpop.xlane.xlu0 %887
      %v889 = vrcp.pop %v885
      %v890 = vmul.f32 %v880, %v889
      %v891 = vrcp.pop %v888
      %v892 = vmul.f32 %v882, %v891
      %v893 = vpack.c.bf16 %v892, %v890
      %v895 = vsel %vm870, %v893, 0
      %897 = vmatprep.subr.bf16.mxu0 0
      %898 = vmatpush1.bf16.msra.mxu0 %v821
      %899 = vmatprep.subr.bf16.mxu0 0
      %900 = vmatpush1.bf16.msra.mxu0 0
      %901 = vmatprep.subr.bf16.mxu0 0
      %902 = vmatpush1.bf16.msra.mxu0 0
      %903 = vmatprep.subr.bf16.mxu0 0
      %904 = vmatpush1.bf16.msra.mxu0 0
      %905 = vmatprep.subr.bf16.mxu0 0
      %906 = vmatpush1.bf16.msra.mxu0 0
      %907 = vmatprep.subr.bf16.mxu0 0
      %908 = vmatpush1.bf16.msra.mxu0 0
      %909 = vmatprep.subr.bf16.mxu0 0
      %910 = vmatpush1.bf16.msra.mxu0 0
      %911 = vmatprep.subr.bf16.mxu0 0
      %912 = vmatpush1.bf16.msra.mxu0 0
      %913 = vmatprep.subr.bf16.mxu0 0
      %914 = vmatpush1.bf16.msra.mxu0 0
      %915 = vmatprep.subr.bf16.mxu0 0
      %916 = vmatpush1.bf16.msra.mxu0 0
      %917 = vmatprep.subr.bf16.mxu0 0
      %918 = vmatpush1.bf16.msra.mxu0 0
      %919 = vmatprep.subr.bf16.mxu0 0
      %920 = vmatpush1.bf16.msra.mxu0 0
      %921 = vmatprep.subr.bf16.mxu0 0
      %922 = vmatpush1.bf16.msra.mxu0 0
      %923 = vmatprep.subr.bf16.mxu0 0
      %924 = vmatpush1.bf16.msra.mxu0 0
      %925 = vmatprep.subr.bf16.mxu0 0
      %926 = vmatpush1.bf16.msra.mxu0 0
      %927 = vmatprep.subr.bf16.mxu0 0
      %928 = vmatpush1.bf16.msra.mxu0 0
      %929 = vmatprep.mubr.bf16.mxu0 0
      %930 = vmatmul.mubr.bf16.gmra.mrb[0].mxu0 %v895
      %v931 = vpop.f32.mrb[0].mxu0
      %v932 = vadd.f32 0.0, %v931
      %v933 = vpop.f32.mrb[0].mxu0
      %v934 = vpop.f32.mrb[0].mxu0
      %v935 = vadd.f32 0.0, %v934
      %v936 = vpop.f32.mrb[0].mxu0
      %937 = vdwg.mxu0
      %939 = vrot.lane.b32.xlu0 %v819, 96
      %v940 = vpop.permute.xlu0 %939
      %942 = vrot.lane.b32.xlu0 %v820, 96
      %v943 = vpop.permute.xlu0 %942
      %v945 = vsel %vm822, %v940, 0
      %v948 = vsel %vm822, %v943, 0
      %950 = vmatprep.subr.bf16.mxu0 0
      %951 = vmatpush1.bf16.xpose.msra.mxu0 %v948
      %952 = vmatprep.subr.bf16.mxu0 0
      %953 = vmatpush1.bf16.xpose.msra.mxu0 0
      %954 = vmatprep.subr.bf16.mxu0 0
      %955 = vmatpush1.bf16.xpose.msra.mxu0 0
      %956 = vmatprep.subr.bf16.mxu0 0
      %957 = vmatpush1.bf16.xpose.msra.mxu0 0
      %958 = vmatprep.subr.bf16.mxu0 0
      %959 = vmatpush1.bf16.xpose.msra.mxu0 0
      %960 = vmatprep.subr.bf16.mxu0 0
      %961 = vmatpush1.bf16.xpose.msra.mxu0 0
      %962 = vmatprep.subr.bf16.mxu0 0
      %963 = vmatpush1.bf16.xpose.msra.mxu0 0
      %964 = vmatprep.subr.bf16.mxu0 0
      %965 = vmatpush1.bf16.xpose.msra.mxu0 0
      %966 = vmatprep.subr.bf16.mxu0 0
      %967 = vmatpush1.bf16.xpose.msra.mxu0 0
      %968 = vmatprep.subr.bf16.mxu0 0
      %969 = vmatpush1.bf16.xpose.msra.mxu0 0
      %970 = vmatprep.subr.bf16.mxu0 0
      %971 = vmatpush1.bf16.xpose.msra.mxu0 0
      %972 = vmatprep.subr.bf16.mxu0 0
      %973 = vmatpush1.bf16.xpose.msra.mxu0 0
      %974 = vmatprep.subr.bf16.mxu0 0
      %975 = vmatpush1.bf16.xpose.msra.mxu0 0
      %976 = vmatprep.subr.bf16.mxu0 0
      %977 = vmatpush1.bf16.xpose.msra.mxu0 0
      %978 = vmatprep.subr.bf16.mxu0 0
      %979 = vmatpush1.bf16.xpose.msra.mxu0 0
      %980 = vmatprep.subr.bf16.mxu0 0
      %981 = vmatpush1.bf16.xpose.msra.mxu0 0
      %982 = vmatprep.mubr.bf16.mxu0 0
      %983 = vmatmul.mubr.bf16.gmra.mrb[0].mxu0 %v945
      %v984 = vpop.f32.mrb[0].mxu0
      %v985 = vadd.f32 0.0, %v984
      %v986 = vpop.f32.mrb[0].mxu0
      %v987 = vpop.f32.mrb[0].mxu0
      %v988 = vadd.f32 0.0, %v987
      %v989 = vpop.f32.mrb[0].mxu0
      %990 = vdwg.mxu0
      %v991 = vsel %vm870, %v985, -inf
      %992 = vmax.xlane.f32.xlu0 %v991
      %v993 = vpop.xlane.xlu0 %992
      %v994 = vsel %vm870, %v988, -inf
      %995 = vmax.xlane.f32.xlu0 %v994
      %v996 = vpop.xlane.xlu0 %995
      %v997 = vsub.f32 %v985, %v993
      %v998 = vsub.f32 %v988, %v996
      %v999 = vmul.f32 %v997, 1.442695
      %v1000 = vpow.pop %v999
      %v1001 = vmul.f32 %v998, 1.442695
      %v1002 = vpow.pop %v1001
      %v1003 = vsel %vm870, %v1000, 0.0
      %1004 = vadd.xlane.f32.xlu0 %v1003
      %v1005 = vpop.xlane.xlu0 %1004
      %v1006 = vsel %vm870, %v1002, 0.0
      %1007 = vadd.xlane.f32.xlu0 %v1006
      %v1008 = vpop.xlane.xlu0 %1007
      %v1009 = vrcp.pop %v1005
      %v1010 = vmul.f32 %v1000, %v1009
      %v1011 = vrcp.pop %v1008
      %v1012 = vmul.f32 %v1002, %v1011
      %v1013 = vpack.c.bf16 %v1012, %v1010
      %1015 = vrot.lane.b32.xlu0 %v821, 96
      %v1016 = vpop.permute.xlu0 %1015
      %v1019 = vsel %vm870, %v1013, 0
      %1021 = vmatprep.subr.bf16.mxu0 0
      %1022 = vmatpush1.bf16.msra.mxu0 %v1016
      %1023 = vmatprep.subr.bf16.mxu0 0
      %1024 = vmatpush1.bf16.msra.mxu0 0
      %1025 = vmatprep.subr.bf16.mxu0 0
      %1026 = vmatpush1.bf16.msra.mxu0 0
      %1027 = vmatprep.subr.bf16.mxu0 0
      %1028 = vmatpush1.bf16.msra.mxu0 0
      %1029 = vmatprep.subr.bf16.mxu0 0
      %1030 = vmatpush1.bf16.msra.mxu0 0
      %1031 = vmatprep.subr.bf16.mxu0 0
      %1032 = vmatpush1.bf16.msra.mxu0 0
      %1033 = vmatprep.subr.bf16.mxu0 0
      %1034 = vmatpush1.bf16.msra.mxu0 0
      %1035 = vmatprep.subr.bf16.mxu0 0
      %1036 = vmatpush1.bf16.msra.mxu0 0
      %1037 = vmatprep.subr.bf16.mxu0 0
      %1038 = vmatpush1.bf16.msra.mxu0 0
      %1039 = vmatprep.subr.bf16.mxu0 0
      %1040 = vmatpush1.bf16.msra.mxu0 0
      %1041 = vmatprep.subr.bf16.mxu0 0
      %1042 = vmatpush1.bf16.msra.mxu0 0
      %1043 = vmatprep.subr.bf16.mxu0 0
      %1044 = vmatpush1.bf16.msra.mxu0 0
      %1045 = vmatprep.subr.bf16.mxu0 0
      %1046 = vmatpush1.bf16.msra.mxu0 0
      %1047 = vmatprep.subr.bf16.mxu0 0
      %1048 = vmatpush1.bf16.msra.mxu0 0
      %1049 = vmatprep.subr.bf16.mxu0 0
      %1050 = vmatpush1.bf16.msra.mxu0 0
      %1051 = vmatprep.subr.bf16.mxu0 0
      %1052 = vmatpush1.bf16.msra.mxu0 0
      %1053 = vmatprep.mubr.bf16.mxu0 0
      %1054 = vmatmul.mubr.bf16.gmra.mrb[0].mxu0 %v1019
      %v1055 = vpop.f32.mrb[0].mxu0
      %v1056 = vadd.f32 0.0, %v1055
      %v1057 = vpop.f32.mrb[0].mxu0
      %v1058 = vpop.f32.mrb[0].mxu0
      %v1059 = vadd.f32 0.0, %v1058
      %v1060 = vpop.f32.mrb[0].mxu0
      %1061 = vdwg.mxu0
      %1062 = vrot.lane.b32.xlu0 %v819, 64
      %v1063 = vpop.permute.xlu0 %1062
      %1064 = vrot.lane.b32.xlu0 %v820, 64
      %v1065 = vpop.permute.xlu0 %1064
      %v1067 = vsel %vm822, %v1063, 0
      %v1070 = vsel %vm822, %v1065, 0
      %1072 = vmatprep.subr.bf16.mxu0 0
      %1073 = vmatpush1.bf16.xpose.msra.mxu0 %v1070
      %1074 = vmatprep.subr.bf16.mxu0 0
      %1075 = vmatpush1.bf16.xpose.msra.mxu0 0
      %1076 = vmatprep.subr.bf16.mxu0 0
      %1077 = vmatpush1.bf16.xpose.msra.mxu0 0
      %1078 = vmatprep.subr.bf16.mxu0 0
      %1079 = vmatpush1.bf16.xpose.msra.mxu0 0
      %1080 = vmatprep.subr.bf16.mxu0 0
      %1081 = vmatpush1.bf16.xpose.msra.mxu0 0
      %1082 = vmatprep.subr.bf16.mxu0 0
      %1083 = vmatpush1.bf16.xpose.msra.mxu0 0
      %1084 = vmatprep.subr.bf16.mxu0 0
      %1085 = vmatpush1.bf16.xpose.msra.mxu0 0
      %1086 = vmatprep.subr.bf16.mxu0 0
      %1087 = vmatpush1.bf16.xpose.msra.mxu0 0
      %1088 = vmatprep.subr.bf16.mxu0 0
      %1089 = vmatpush1.bf16.xpose.msra.mxu0 0
      %1090 = vmatprep.subr.bf16.mxu0 0
      %1091 = vmatpush1.bf16.xpose.msra.mxu0 0
      %1092 = vmatprep.subr.bf16.mxu0 0
      %1093 = vmatpush1.bf16.xpose.msra.mxu0 0
      %1094 = vmatprep.subr.bf16.mxu0 0
      %1095 = vmatpush1.bf16.xpose.msra.mxu0 0
      %1096 = vmatprep.subr.bf16.mxu0 0
      %1097 = vmatpush1.bf16.xpose.msra.mxu0 0
      %1098 = vmatprep.subr.bf16.mxu0 0
      %1099 = vmatpush1.bf16.xpose.msra.mxu0 0
      %1100 = vmatprep.subr.bf16.mxu0 0
      %1101 = vmatpush1.bf16.xpose.msra.mxu0 0
      %1102 = vmatprep.subr.bf16.mxu0 0
      %1103 = vmatpush1.bf16.xpose.msra.mxu0 0
      %1104 = vmatprep.mubr.bf16.mxu0 0
      %1105 = vmatmul.mubr.bf16.gmra.mrb[0].mxu0 %v1067
      %v1106 = vpop.f32.mrb[0].mxu0
      %v1107 = vadd.f32 0.0, %v1106
      %v1108 = vpop.f32.mrb[0].mxu0
      %v1109 = vpop.f32.mrb[0].mxu0
      %v1110 = vadd.f32 0.0, %v1109
      %v1111 = vpop.f32.mrb[0].mxu0
      %1112 = vdwg.mxu0
      %v1113 = vsel %vm870, %v1107, -inf
      %1114 = vmax.xlane.f32.xlu0 %v1113
      %v1115 = vpop.xlane.xlu0 %1114
      %v1116 = vsel %vm870, %v1110, -inf
      %1117 = vmax.xlane.f32.xlu0 %v1116
      %v1118 = vpop.xlane.xlu0 %1117
      %v1119 = vsub.f32 %v1107, %v1115
      %v1120 = vsub.f32 %v1110, %v1118
      %v1121 = vmul.f32 %v1119, 1.442695
      %v1122 = vpow.pop %v1121
      %v1123 = vmul.f32 %v1120, 1.442695
      %v1124 = vpow.pop %v1123
      %v1125 = vsel %vm870, %v1122, 0.0
      %1126 = vadd.xlane.f32.xlu0 %v1125
      %v1127 = vpop.xlane.xlu0 %1126
      %v1128 = vsel %vm870, %v1124, 0.0
      %1129 = vadd.xlane.f32.xlu0 %v1128
      %v1130 = vpop.xlane.xlu0 %1129
      %v1131 = vrcp.pop %v1127
      %v1132 = vmul.f32 %v1122, %v1131
      %v1133 = vrcp.pop %v1130
      %v1134 = vmul.f32 %v1124, %v1133
      %v1135 = vpack.c.bf16 %v1134, %v1132
      %1136 = vrot.lane.b32.xlu0 %v821, 64
      %v1137 = vpop.permute.xlu0 %1136
      %v1140 = vsel %vm870, %v1135, 0
      %1142 = vmatprep.subr.bf16.mxu0 0
      %1143 = vmatpush1.bf16.msra.mxu0 %v1137
      %1144 = vmatprep.subr.bf16.mxu0 0
      %1145 = vmatpush1.bf16.msra.mxu0 0
      %1146 = vmatprep.subr.bf16.mxu0 0
      %1147 = vmatpush1.bf16.msra.mxu0 0
      %1148 = vmatprep.subr.bf16.mxu0 0
      %1149 = vmatpush1.bf16.msra.mxu0 0
      %1150 = vmatprep.subr.bf16.mxu0 0
      %1151 = vmatpush1.bf16.msra.mxu0 0
      %1152 = vmatprep.subr.bf16.mxu0 0
      %1153 = vmatpush1.bf16.msra.mxu0 0
      %1154 = vmatprep.subr.bf16.mxu0 0
      %1155 = vmatpush1.bf16.msra.mxu0 0
      %1156 = vmatprep.subr.bf16.mxu0 0
      %1157 = vmatpush1.bf16.msra.mxu0 0
      %1158 = vmatprep.subr.bf16.mxu0 0
      %1159 = vmatpush1.bf16.msra.mxu0 0
      %1160 = vmatprep.subr.bf16.mxu0 0
      %1161 = vmatpush1.bf16.msra.mxu0 0
      %1162 = vmatprep.subr.bf16.mxu0 0
      %1163 = vmatpush1.bf16.msra.mxu0 0
      %1164 = vmatprep.subr.bf16.mxu0 0
      %1165 = vmatpush1.bf16.msra.mxu0 0
      %1166 = vmatprep.subr.bf16.mxu0 0
      %1167 = vmatpush1.bf16.msra.mxu0 0
      %1168 = vmatprep.subr.bf16.mxu0 0
      %1169 = vmatpush1.bf16.msra.mxu0 0
      %1170 = vmatprep.subr.bf16.mxu0 0
      %1171 = vmatpush1.bf16.msra.mxu0 0
      %1172 = vmatprep.subr.bf16.mxu0 0
      %1173 = vmatpush1.bf16.msra.mxu0 0
      %1174 = vmatprep.mubr.bf16.mxu0 0
      %1175 = vmatmul.mubr.bf16.gmra.mrb[0].mxu0 %v1140
      %v1176 = vpop.f32.mrb[0].mxu0
      %v1177 = vadd.f32 0.0, %v1176
      %v1178 = vpop.f32.mrb[0].mxu0
      %v1179 = vpop.f32.mrb[0].mxu0
      %v1180 = vadd.f32 0.0, %v1179
      %v1181 = vpop.f32.mrb[0].mxu0
      %1182 = vdwg.mxu0
      %1183 = vrot.lane.b32.xlu0 %v819, 32
      %v1184 = vpop.permute.xlu0 %1183
      %1185 = vrot.lane.b32.xlu0 %v820, 32
      %v1186 = vpop.permute.xlu0 %1185
      %v1188 = vsel %vm822, %v1184, 0
      %v1191 = vsel %vm822, %v1186, 0
      %1193 = vmatprep.subr.bf16.mxu0 0
      %1194 = vmatpush1.bf16.xpose.msra.mxu0 %v1191
      %1195 = vmatprep.subr.bf16.mxu0 0
      %1196 = vmatpush1.bf16.xpose.msra.mxu0 0
      %1197 = vmatprep.subr.bf16.mxu0 0
      %1198 = vmatpush1.bf16.xpose.msra.mxu0 0
      %1199 = vmatprep.subr.bf16.mxu0 0
      %1200 = vmatpush1.bf16.xpose.msra.mxu0 0
      %1201 = vmatprep.subr.bf16.mxu0 0
      %1202 = vmatpush1.bf16.xpose.msra.mxu0 0
      %1203 = vmatprep.subr.bf16.mxu0 0
      %1204 = vmatpush1.bf16.xpose.msra.mxu0 0
      %1205 = vmatprep.subr.bf16.mxu0 0
      %1206 = vmatpush1.bf16.xpose.msra.mxu0 0
      %1207 = vmatprep.subr.bf16.mxu0 0
      %1208 = vmatpush1.bf16.xpose.msra.mxu0 0
      %1209 = vmatprep.subr.bf16.mxu0 0
      %1210 = vmatpush1.bf16.xpose.msra.mxu0 0
      %1211 = vmatprep.subr.bf16.mxu0 0
      %1212 = vmatpush1.bf16.xpose.msra.mxu0 0
      %1213 = vmatprep.subr.bf16.mxu0 0
      %1214 = vmatpush1.bf16.xpose.msra.mxu0 0
      %1215 = vmatprep.subr.bf16.mxu0 0
      %1216 = vmatpush1.bf16.xpose.msra.mxu0 0
      %1217 = vmatprep.subr.bf16.mxu0 0
      %1218 = vmatpush1.bf16.xpose.msra.mxu0 0
      %1219 = vmatprep.subr.bf16.mxu0 0
      %1220 = vmatpush1.bf16.xpose.msra.mxu0 0
      %1221 = vmatprep.subr.bf16.mxu0 0
      %1222 = vmatpush1.bf16.xpose.msra.mxu0 0
      %1223 = vmatprep.subr.bf16.mxu0 0
      %1224 = vmatpush1.bf16.xpose.msra.mxu0 0
      %1225 = vmatprep.mubr.bf16.mxu0 0
      %1226 = vmatmul.mubr.bf16.gmra.mrb[0].mxu0 %v1188
      %v1227 = vpop.f32.mrb[0].mxu0
      %v1228 = vadd.f32 0.0, %v1227
      %v1229 = vpop.f32.mrb[0].mxu0
      %v1230 = vpop.f32.mrb[0].mxu0
      %v1231 = vadd.f32 0.0, %v1230
      %v1232 = vpop.f32.mrb[0].mxu0
      %1233 = vdwg.mxu0
      %v1234 = vsel %vm870, %v1228, -inf
      %1235 = vmax.xlane.f32.xlu0 %v1234
      %v1236 = vpop.xlane.xlu0 %1235
      %v1237 = vsel %vm870, %v1231, -inf
      %1238 = vmax.xlane.f32.xlu0 %v1237
      %v1239 = vpop.xlane.xlu0 %1238
      %v1240 = vsub.f32 %v1228, %v1236
      %v1241 = vsub.f32 %v1231, %v1239
      %v1242 = vmul.f32 %v1240, 1.442695
      %v1243 = vpow.pop %v1242
      %v1244 = vmul.f32 %v1241, 1.442695
      %v1245 = vpow.pop %v1244
      %v1246 = vsel %vm870, %v1243, 0.0
      %1247 = vadd.xlane.f32.xlu0 %v1246
      %v1248 = vpop.xlane.xlu0 %1247
      %v1249 = vsel %vm870, %v1245, 0.0
      %1250 = vadd.xlane.f32.xlu0 %v1249
      %v1251 = vpop.xlane.xlu0 %1250
      %v1252 = vrcp.pop %v1248
      %v1253 = vmul.f32 %v1243, %v1252
      %v1254 = vrcp.pop %v1251
      %v1255 = vmul.f32 %v1245, %v1254
      %v1256 = vpack.c.bf16 %v1255, %v1253
      %1257 = vrot.lane.b32.xlu0 %v821, 32
      %v1258 = vpop.permute.xlu0 %1257
      %v1261 = vsel %vm870, %v1256, 0
      %1263 = vmatprep.subr.bf16.mxu0 0
      %1264 = vmatpush1.bf16.msra.mxu0 %v1258
      %1265 = vmatprep.subr.bf16.mxu0 0
      %1266 = vmatpush1.bf16.msra.mxu0 0
      %1267 = vmatprep.subr.bf16.mxu0 0
      %1268 = vmatpush1.bf16.msra.mxu0 0
      %1269 = vmatprep.subr.bf16.mxu0 0
      %1270 = vmatpush1.bf16.msra.mxu0 0
      %1271 = vmatprep.subr.bf16.mxu0 0
      %1272 = vmatpush1.bf16.msra.mxu0 0
      %1273 = vmatprep.subr.bf16.mxu0 0
      %1274 = vmatpush1.bf16.msra.mxu0 0
      %1275 = vmatprep.subr.bf16.mxu0 0
      %1276 = vmatpush1.bf16.msra.mxu0 0
      %1277 = vmatprep.subr.bf16.mxu0 0
      %1278 = vmatpush1.bf16.msra.mxu0 0
      %1279 = vmatprep.subr.bf16.mxu0 0
      %1280 = vmatpush1.bf16.msra.mxu0 0
      %1281 = vmatprep.subr.bf16.mxu0 0
      %1282 = vmatpush1.bf16.msra.mxu0 0
      %1283 = vmatprep.subr.bf16.mxu0 0
      %1284 = vmatpush1.bf16.msra.mxu0 0
      %1285 = vmatprep.subr.bf16.mxu0 0
      %1286 = vmatpush1.bf16.msra.mxu0 0
      %1287 = vmatprep.subr.bf16.mxu0 0
      %1288 = vmatpush1.bf16.msra.mxu0 0
      %1289 = vmatprep.subr.bf16.mxu0 0
      %1290 = vmatpush1.bf16.msra.mxu0 0
      %1291 = vmatprep.subr.bf16.mxu0 0
      %1292 = vmatpush1.bf16.msra.mxu0 0
      %1293 = vmatprep.subr.bf16.mxu0 0
      %1294 = vmatpush1.bf16.msra.mxu0 0
      %1295 = vmatprep.mubr.bf16.mxu0 0
      %1296 = vmatmul.mubr.bf16.gmra.mrb[0].mxu0 %v1261
      %v1297 = vpop.f32.mrb[0].mxu0
      %v1298 = vadd.f32 0.0, %v1297
      %v1299 = vpop.f32.mrb[0].mxu0
      %v1300 = vpop.f32.mrb[0].mxu0
      %v1301 = vadd.f32 0.0, %v1300
      %v1302 = vpop.f32.mrb[0].mxu0
      %1303 = vdwg.mxu0
      %1306 = vrot.lane.b32.xlu0 %v1056, 32
      %v1307 = vpop.permute.xlu0 %1306
      %1308 = vrot.lane.b32.xlu0 %v1059, 32
      %v1309 = vpop.permute.xlu0 %1308
      %1314 = vrot.lane.b32.xlu0 %v1177, 64
      %v1315 = vpop.permute.xlu0 %1314
      %1316 = vrot.lane.b32.xlu0 %v1180, 64
      %v1317 = vpop.permute.xlu0 %1316
      %1322 = vrot.lane.b32.xlu0 %v1298, 96
      %v1323 = vpop.permute.xlu0 %1322
      %1324 = vrot.lane.b32.xlu0 %v1301, 96
      %v1325 = vpop.permute.xlu0 %1324
      %v1328 = vsel %vm822, %v932, %v1307
      %v1329 = vsel %vm822, %v935, %v1309
      %v1330 = vsel %vm476, %v1328, %v1315
      %v1331 = vsel %vm476, %v1329, %v1317
      %vm1332 = vcmask 785408
      %v1333 = vsel %vm1332, %v1330, %v1323
      %v1334 = vsel %vm1332, %v1331, %v1325
      %v1335 = vpack.c.bf16 %v1334, %v1333
      %v1336 = vld [vmem:[%s4] sm:$0xf]
      %v1337 = vld [vmem:[%s4 + $0x4] sm:$0xf]
      %v1338 = vld [vmem:[%s4 + $0x8] sm:$0xf]
      %v1339 = vld [vmem:[%s4 + $0xc] sm:$0xf]
      %v1340 = vld [vmem:[%s4 + $0x10] sm:$0xf]
      %v1341 = vld [vmem:[%s4 + $0x14] sm:$0xf]
      %v1342 = vld [vmem:[%s4 + $0x18] sm:$0xf]
      %v1343 = vld [vmem:[%s4 + $0x1c] sm:$0xf]
      %v1344 = vld [vmem:[%s4 + $0x20] sm:$0xf]
      %v1345 = vld [vmem:[%s4 + $0x24] sm:$0xf]
      %v1346 = vld [vmem:[%s4 + $0x28] sm:$0xf]
      %v1347 = vld [vmem:[%s4 + $0x2c] sm:$0xf]
      %v1348 = vld [vmem:[%s4 + $0x30] sm:$0xf]
      %v1349 = vld [vmem:[%s4 + $0x34] sm:$0xf]
      %v1350 = vld [vmem:[%s4 + $0x38] sm:$0xf]
      %v1351 = vld [vmem:[%s4 + $0x3c] sm:$0xf]
      %v1368 = vunpack.c.l.b16 %v1336
      %v1369 = vunpack.c.l.b16 %v1337
      %v1370 = vunpack.c.l.b16 %v1338
      %v1371 = vunpack.c.l.b16 %v1339
      %v1372 = vunpack.c.l.b16 %v1340
      %v1373 = vunpack.c.l.b16 %v1341
      %v1374 = vunpack.c.l.b16 %v1342
      %v1375 = vunpack.c.l.b16 %v1343
      %v1376 = vunpack.c.l.b16 %v1344
      %v1377 = vunpack.c.l.b16 %v1345
      %v1378 = vunpack.c.l.b16 %v1346
      %v1379 = vunpack.c.l.b16 %v1347
      %v1380 = vunpack.c.l.b16 %v1348
      %v1381 = vunpack.c.l.b16 %v1349
      %v1382 = vunpack.c.l.b16 %v1350
      %v1383 = vunpack.c.l.b16 %v1351
      %v1384 = vpack.c.b16 %v1369, %v1368
      %v1385 = vpack.c.b16 %v1371, %v1370
      %v1386 = vpack.c.b16 %v1373, %v1372
      %v1387 = vpack.c.b16 %v1375, %v1374
      %v1388 = vpack.c.b16 %v1377, %v1376
      %v1389 = vpack.c.b16 %v1379, %v1378
      %v1390 = vpack.c.b16 %v1381, %v1380
      %v1391 = vpack.c.b16 %v1383, %v1382
      %1400 = vmatprep.subr.bf16.mxu0 0
      %1401 = vmatpush1.bf16.msra.mxu0 %v1384
      %1402 = vmatprep.subr.bf16.mxu0 0
      %1403 = vmatpush1.bf16.msra.mxu0 %v1385
      %1404 = vmatprep.subr.bf16.mxu0 0
      %1405 = vmatpush1.bf16.msra.mxu0 %v1386
      %1406 = vmatprep.subr.bf16.mxu0 0
      %1407 = vmatpush1.bf16.msra.mxu0 %v1387
      %1408 = vmatprep.subr.bf16.mxu0 0
      %1409 = vmatpush1.bf16.msra.mxu0 %v1388
      %1410 = vmatprep.subr.bf16.mxu0 0
      %1411 = vmatpush1.bf16.msra.mxu0 %v1389
      %1412 = vmatprep.subr.bf16.mxu0 0
      %1413 = vmatpush1.bf16.msra.mxu0 %v1390
      %1414 = vmatprep.subr.bf16.mxu0 0
      %1415 = vmatpush1.bf16.msra.mxu0 %v1391
      %1416 = vmatprep.subr.bf16.mxu0 0
      %1417 = vmatpush1.bf16.msra.mxu0 0
      %1418 = vmatprep.subr.bf16.mxu0 0
      %1419 = vmatpush1.bf16.msra.mxu0 0
      %1420 = vmatprep.subr.bf16.mxu0 0
      %1421 = vmatpush1.bf16.msra.mxu0 0
      %1422 = vmatprep.subr.bf16.mxu0 0
      %1423 = vmatpush1.bf16.msra.mxu0 0
      %1424 = vmatprep.subr.bf16.mxu0 0
      %1425 = vmatpush1.bf16.msra.mxu0 0
      %1426 = vmatprep.subr.bf16.mxu0 0
      %1427 = vmatpush1.bf16.msra.mxu0 0
      %1428 = vmatprep.subr.bf16.mxu0 0
      %1429 = vmatpush1.bf16.msra.mxu0 0
      %1430 = vmatprep.subr.bf16.mxu0 0
      %1431 = vmatpush1.bf16.msra.mxu0 0
      %1432 = vmatprep.mubr.bf16.mxu0 0
      %1433 = vmatmul.mubr.bf16.gmra.mrb[0].mxu0 %v1335
      %v1434 = vpop.f32.mrb[0].mxu0
      %v1435 = vadd.f32 0.0, %v1434
      %v1436 = vpop.f32.mrb[0].mxu0
      %v1437 = vpop.f32.mrb[0].mxu0
      %v1438 = vadd.f32 0.0, %v1437
      %v1439 = vpop.f32.mrb[0].mxu0
      %1440 = vdwg.mxu0
      %v1441 = vadd.f32 %v515, %v1435
      %v1442 = vadd.f32 %v518, %v1438
      %v1443 = vlaneseq
      %v1444 = vshrl.u32 %v1443, 7
      %v1445 = vsub.s32 2, %v1444
      %v1446 = vrot.slane %v521, %v1445
      %v1447 = vadd.f32 %v1441, %v1446
      %v1448 = vadd.f32 %v1442, %v1446
      %1449 = vadd.xlane.f32.xlu0 %v1447
      %v1450 = vpop.xlane.xlu0 %1449
      %1451 = vadd.xlane.f32.xlu0 %v1448
      %v1452 = vpop.xlane.xlu0 %1451
      %v1453 = vmul.f32 %v1450, %v526
      %v1454 = vmul.f32 %v1452, %v526
      %v1455 = vsub.f32 %v1447, %v1453
      %v1456 = vsub.f32 %v1448, %v1454
      %v1457 = vmul.f32 %v1455, %v1455
      %v1458 = vmul.f32 %v1456, %v1456
      %1459 = vadd.xlane.f32.xlu0 %v1457
      %v1460 = vpop.xlane.xlu0 %1459
      %1461 = vadd.xlane.f32.xlu0 %v1458
      %v1462 = vpop.xlane.xlu0 %1461
      %v1463 = vmul.f32 %v1460, %v526
      %v1464 = vmul.f32 %v1462, %v526
      %v1465 = vadd.f32 %v1463, 1e-06
      %v1466 = vadd.f32 %v1464, 1e-06
      %v1467 = vrsqrt.pop %v1465
      %v1468 = vrsqrt.pop %v1466
      %v1469 = vmul.f32 %v1455, %v1467
      %v1470 = vmul.f32 %v1456, %v1468
      %v1471 = vlaneseq
      %v1472 = vshrl.u32 %v1471, 7
      %v1473 = vsub.s32 3, %v1472
      %v1474 = vrot.slane %v521, %v1473
      %v1475 = vmul.f32 %v1469, %v1474
      %v1476 = vmul.f32 %v1470, %v1474
      %v1477 = vlaneseq
      %v1478 = vshrl.u32 %v1477, 7
      %v1479 = vsub.s32 4, %v1478
      %v1480 = vrot.slane %v521, %v1479
      %v1481 = vadd.f32 %v1475, %v1480
      %v1482 = vadd.f32 %v1476, %v1480
      %v1483 = vpack.c.bf16 %v1482, %v1481
      %v1484 = vld [vmem:[%s5] sm:$0xff]
      %v1485 = vld [vmem:[%s5 + $0x8] sm:$0xff]
      %v1486 = vld [vmem:[%s5 + $0x10] sm:$0xff]
      %v1487 = vld [vmem:[%s5 + $0x18] sm:$0xff]
      %v1488 = vld [vmem:[%s5 + $0x20] sm:$0xff]
      %v1489 = vld [vmem:[%s5 + $0x28] sm:$0xff]
      %v1490 = vld [vmem:[%s5 + $0x30] sm:$0xff]
      %v1491 = vld [vmem:[%s5 + $0x38] sm:$0xff]
      %v1492 = vld [vmem:[%s5 + $0x40] sm:$0xff]
      %v1493 = vld [vmem:[%s5 + $0x48] sm:$0xff]
      %v1494 = vld [vmem:[%s5 + $0x50] sm:$0xff]
      %v1495 = vld [vmem:[%s5 + $0x58] sm:$0xff]
      %v1496 = vld [vmem:[%s5 + $0x60] sm:$0xff]
      %v1497 = vld [vmem:[%s5 + $0x68] sm:$0xff]
      %v1498 = vld [vmem:[%s5 + $0x70] sm:$0xff]
      %v1499 = vld [vmem:[%s5 + $0x78] sm:$0xff]
      %v1500 = vld [vmem:[%s9] sm:$0x3]
      %v1502 = vlaneseq
      %v1503 = vshrl.u32 %v1502, 7
      %v1504 = vsub.s32 0, %v1503
      %v1505 = vrot.slane %v1500, %v1504
      %v1506 = vlaneseq
      %v1507 = vshrl.u32 %v1506, 7
      %v1508 = vsub.s32 1, %v1507
      %v1509 = vrot.slane %v1500, %v1508
      %v1528 = vunpack.c.l.b16 %v1484
      %v1529 = vunpack.c.h.b16 %v1484
      %v1530 = vunpack.c.l.b16 %v1485
      %v1531 = vunpack.c.h.b16 %v1485
      %v1532 = vunpack.c.l.b16 %v1486
      %v1533 = vunpack.c.h.b16 %v1486
      %v1534 = vunpack.c.l.b16 %v1487
      %v1535 = vunpack.c.h.b16 %v1487
      %v1536 = vunpack.c.l.b16 %v1488
      %v1537 = vunpack.c.h.b16 %v1488
      %v1538 = vunpack.c.l.b16 %v1489
      %v1539 = vunpack.c.h.b16 %v1489
      %v1540 = vunpack.c.l.b16 %v1490
      %v1541 = vunpack.c.h.b16 %v1490
      %v1542 = vunpack.c.l.b16 %v1491
      %v1543 = vunpack.c.h.b16 %v1491
      %v1544 = vunpack.c.l.b16 %v1492
      %v1545 = vunpack.c.h.b16 %v1492
      %v1546 = vunpack.c.l.b16 %v1493
      %v1547 = vunpack.c.h.b16 %v1493
      %v1548 = vunpack.c.l.b16 %v1494
      %v1549 = vunpack.c.h.b16 %v1494
      %v1550 = vunpack.c.l.b16 %v1495
      %v1551 = vunpack.c.h.b16 %v1495
      %v1552 = vunpack.c.l.b16 %v1496
      %v1553 = vunpack.c.h.b16 %v1496
      %v1554 = vunpack.c.l.b16 %v1497
      %v1555 = vunpack.c.h.b16 %v1497
      %v1556 = vunpack.c.l.b16 %v1498
      %v1557 = vunpack.c.h.b16 %v1498
      %v1558 = vunpack.c.l.b16 %v1499
      %v1559 = vunpack.c.h.b16 %v1499
      %v1560 = vpack.c.b16 %v1530, %v1528
      %v1561 = vpack.c.b16 %v1531, %v1529
      %v1562 = vpack.c.b16 %v1534, %v1532
      %v1563 = vpack.c.b16 %v1535, %v1533
      %v1564 = vpack.c.b16 %v1538, %v1536
      %v1565 = vpack.c.b16 %v1539, %v1537
      %v1566 = vpack.c.b16 %v1542, %v1540
      %v1567 = vpack.c.b16 %v1543, %v1541
      %v1568 = vpack.c.b16 %v1546, %v1544
      %v1569 = vpack.c.b16 %v1547, %v1545
      %v1570 = vpack.c.b16 %v1550, %v1548
      %v1571 = vpack.c.b16 %v1551, %v1549
      %v1572 = vpack.c.b16 %v1554, %v1552
      %v1573 = vpack.c.b16 %v1555, %v1553
      %v1574 = vpack.c.b16 %v1558, %v1556
      %v1575 = vpack.c.b16 %v1559, %v1557
      %1592 = vmatprep.subr.bf16.mxu0 %v1561
      %1593 = vmatpush1.bf16.msra.mxu0 %v1560
      %1594 = vmatprep.subr.bf16.mxu0 %v1563
      %1595 = vmatpush1.bf16.msra.mxu0 %v1562
      %1596 = vmatprep.subr.bf16.mxu0 %v1565
      %1597 = vmatpush1.bf16.msra.mxu0 %v1564
      %1598 = vmatprep.subr.bf16.mxu0 %v1567
      %1599 = vmatpush1.bf16.msra.mxu0 %v1566
      %1600 = vmatprep.subr.bf16.mxu0 %v1569
      %1601 = vmatpush1.bf16.msra.mxu0 %v1568
      %1602 = vmatprep.subr.bf16.mxu0 %v1571
      %1603 = vmatpush1.bf16.msra.mxu0 %v1570
      %1604 = vmatprep.subr.bf16.mxu0 %v1573
      %1605 = vmatpush1.bf16.msra.mxu0 %v1572
      %1606 = vmatprep.subr.bf16.mxu0 %v1575
      %1607 = vmatpush1.bf16.msra.mxu0 %v1574
      %1608 = vmatprep.subr.bf16.mxu0 0
      %1609 = vmatpush1.bf16.msra.mxu0 0
      %1610 = vmatprep.subr.bf16.mxu0 0
      %1611 = vmatpush1.bf16.msra.mxu0 0
      %1612 = vmatprep.subr.bf16.mxu0 0
      %1613 = vmatpush1.bf16.msra.mxu0 0
      %1614 = vmatprep.subr.bf16.mxu0 0
      %1615 = vmatpush1.bf16.msra.mxu0 0
      %1616 = vmatprep.subr.bf16.mxu0 0
      %1617 = vmatpush1.bf16.msra.mxu0 0
      %1618 = vmatprep.subr.bf16.mxu0 0
      %1619 = vmatpush1.bf16.msra.mxu0 0
      %1620 = vmatprep.subr.bf16.mxu0 0
      %1621 = vmatpush1.bf16.msra.mxu0 0
      %1622 = vmatprep.subr.bf16.mxu0 0
      %1623 = vmatpush1.bf16.msra.mxu0 0
      %1624 = vmatprep.mubr.bf16.mxu0 0
      %1625 = vmatmul.mubr.bf16.gmra.mrb[0].mxu0 %v1483
      %v1626 = vpop.f32.mrb[0].mxu0
      %v1627 = vadd.f32 %v1505, %v1626
      %v1628 = vpop.f32.mrb[0].mxu0
      %v1629 = vadd.f32 %v1509, %v1628
      %v1630 = vpop.f32.mrb[0].mxu0
      %v1631 = vadd.f32 %v1505, %v1630
      %v1632 = vpop.f32.mrb[0].mxu0
      %v1633 = vadd.f32 %v1509, %v1632
      %1634 = vdwg.mxu0
      %v1635 = vmul.f32 %v1627, 0.5
      %v1636 = vmul.f32 %v1629, 0.5
      %v1637 = vmul.f32 %v1631, 0.5
      %v1638 = vmul.f32 %v1633, 0.5
      %v1639 = vmul.f32 %v1627, 0.044715
      %v1640 = vmul.f32 %v1629, 0.044715
      %v1641 = vmul.f32 %v1631, 0.044715
      %v1642 = vmul.f32 %v1633, 0.044715
      %v1643 = vmul.f32 %v1639, %v1627
      %v1644 = vmul.f32 %v1640, %v1629
      %v1645 = vmul.f32 %v1641, %v1631
      %v1646 = vmul.f32 %v1642, %v1633
      %v1647 = vmul.f32 %v1643, %v1627
      %v1648 = vmul.f32 %v1644, %v1629
      %v1649 = vmul.f32 %v1645, %v1631
      %v1650 = vmul.f32 %v1646, %v1633
      %v1651 = vadd.f32 %v1627, %v1647
      %v1652 = vadd.f32 %v1629, %v1648
      %v1653 = vadd.f32 %v1631, %v1649
      %v1654 = vadd.f32 %v1633, %v1650
      %v1655 = vmul.f32 %v1651, 0.7978846
      %v1656 = vmul.f32 %v1652, 0.7978846
      %v1657 = vmul.f32 %v1653, 0.7978846
      %v1658 = vmul.f32 %v1654, 0.7978846
      %v1659 = vtanh.pop %v1655
      %v1660 = vtanh.pop %v1656
      %v1661 = vtanh.pop %v1657
      %v1662 = vtanh.pop %v1658
      %v1663 = vadd.f32 %v1659, 1.0
      %v1664 = vadd.f32 %v1660, 1.0
      %v1665 = vadd.f32 %v1661, 1.0
      %v1666 = vadd.f32 %v1662, 1.0
      %v1667 = vmul.f32 %v1635, %v1663
      %v1668 = vmul.f32 %v1636, %v1664
      %v1669 = vmul.f32 %v1637, %v1665
      %v1670 = vmul.f32 %v1638, %v1666
      %v1671 = vpack.c.bf16 %v1669, %v1667
      %v1672 = vpack.c.bf16 %v1670, %v1668
      %v1673 = vld [vmem:[%s6] sm:$0xf]
      %v1674 = vld [vmem:[%s6 + $0x4] sm:$0xf]
      %v1675 = vld [vmem:[%s6 + $0x8] sm:$0xf]
      %v1676 = vld [vmem:[%s6 + $0xc] sm:$0xf]
      %v1677 = vld [vmem:[%s6 + $0x10] sm:$0xf]
      %v1678 = vld [vmem:[%s6 + $0x14] sm:$0xf]
      %v1679 = vld [vmem:[%s6 + $0x18] sm:$0xf]
      %v1680 = vld [vmem:[%s6 + $0x1c] sm:$0xf]
      %v1681 = vld [vmem:[%s6 + $0x20] sm:$0xf]
      %v1682 = vld [vmem:[%s6 + $0x24] sm:$0xf]
      %v1683 = vld [vmem:[%s6 + $0x28] sm:$0xf]
      %v1684 = vld [vmem:[%s6 + $0x2c] sm:$0xf]
      %v1685 = vld [vmem:[%s6 + $0x30] sm:$0xf]
      %v1686 = vld [vmem:[%s6 + $0x34] sm:$0xf]
      %v1687 = vld [vmem:[%s6 + $0x38] sm:$0xf]
      %v1688 = vld [vmem:[%s6 + $0x3c] sm:$0xf]
      %v1689 = vld [vmem:[%s6 + $0x40] sm:$0xf]
      %v1690 = vld [vmem:[%s6 + $0x44] sm:$0xf]
      %v1691 = vld [vmem:[%s6 + $0x48] sm:$0xf]
      %v1692 = vld [vmem:[%s6 + $0x4c] sm:$0xf]
      %v1693 = vld [vmem:[%s6 + $0x50] sm:$0xf]
      %v1694 = vld [vmem:[%s6 + $0x54] sm:$0xf]
      %v1695 = vld [vmem:[%s6 + $0x58] sm:$0xf]
      %v1696 = vld [vmem:[%s6 + $0x5c] sm:$0xf]
      %v1697 = vld [vmem:[%s6 + $0x60] sm:$0xf]
      %v1698 = vld [vmem:[%s6 + $0x64] sm:$0xf]
      %v1699 = vld [vmem:[%s6 + $0x68] sm:$0xf]
      %v1700 = vld [vmem:[%s6 + $0x6c] sm:$0xf]
      %v1701 = vld [vmem:[%s6 + $0x70] sm:$0xf]
      %v1702 = vld [vmem:[%s6 + $0x74] sm:$0xf]
      %v1703 = vld [vmem:[%s6 + $0x78] sm:$0xf]
      %v1704 = vld [vmem:[%s6 + $0x7c] sm:$0xf]
      %v1737 = vunpack.c.l.b16 %v1673
      %v1738 = vunpack.c.l.b16 %v1674
      %v1739 = vunpack.c.l.b16 %v1675
      %v1740 = vunpack.c.l.b16 %v1676
      %v1741 = vunpack.c.l.b16 %v1677
      %v1742 = vunpack.c.l.b16 %v1678
      %v1743 = vunpack.c.l.b16 %v1679
      %v1744 = vunpack.c.l.b16 %v1680
      %v1745 = vunpack.c.l.b16 %v1681
      %v1746 = vunpack.c.l.b16 %v1682
      %v1747 = vunpack.c.l.b16 %v1683
      %v1748 = vunpack.c.l.b16 %v1684
      %v1749 = vunpack.c.l.b16 %v1685
      %v1750 = vunpack.c.l.b16 %v1686
      %v1751 = vunpack.c.l.b16 %v1687
      %v1752 = vunpack.c.l.b16 %v1688
      %v1753 = vunpack.c.l.b16 %v1689
      %v1754 = vunpack.c.l.b16 %v1690
      %v1755 = vunpack.c.l.b16 %v1691
      %v1756 = vunpack.c.l.b16 %v1692
      %v1757 = vunpack.c.l.b16 %v1693
      %v1758 = vunpack.c.l.b16 %v1694
      %v1759 = vunpack.c.l.b16 %v1695
      %v1760 = vunpack.c.l.b16 %v1696
      %v1761 = vunpack.c.l.b16 %v1697
      %v1762 = vunpack.c.l.b16 %v1698
      %v1763 = vunpack.c.l.b16 %v1699
      %v1764 = vunpack.c.l.b16 %v1700
      %v1765 = vunpack.c.l.b16 %v1701
      %v1766 = vunpack.c.l.b16 %v1702
      %v1767 = vunpack.c.l.b16 %v1703
      %v1768 = vunpack.c.l.b16 %v1704
      %v1769 = vpack.c.b16 %v1738, %v1737
      %v1770 = vpack.c.b16 %v1740, %v1739
      %v1771 = vpack.c.b16 %v1742, %v1741
      %v1772 = vpack.c.b16 %v1744, %v1743
      %v1773 = vpack.c.b16 %v1746, %v1745
      %v1774 = vpack.c.b16 %v1748, %v1747
      %v1775 = vpack.c.b16 %v1750, %v1749
      %v1776 = vpack.c.b16 %v1752, %v1751
      %v1777 = vpack.c.b16 %v1754, %v1753
      %v1778 = vpack.c.b16 %v1756, %v1755
      %v1779 = vpack.c.b16 %v1758, %v1757
      %v1780 = vpack.c.b16 %v1760, %v1759
      %v1781 = vpack.c.b16 %v1762, %v1761
      %v1782 = vpack.c.b16 %v1764, %v1763
      %v1783 = vpack.c.b16 %v1766, %v1765
      %v1784 = vpack.c.b16 %v1768, %v1767
      %1801 = vmatprep.subr.bf16.mxu0 0
      %1802 = vmatpush1.bf16.msra.mxu0 %v1769
      %1803 = vmatprep.subr.bf16.mxu0 0
      %1804 = vmatpush1.bf16.msra.mxu0 %v1770
      %1805 = vmatprep.subr.bf16.mxu0 0
      %1806 = vmatpush1.bf16.msra.mxu0 %v1771
      %1807 = vmatprep.subr.bf16.mxu0 0
      %1808 = vmatpush1.bf16.msra.mxu0 %v1772
      %1809 = vmatprep.subr.bf16.mxu0 0
      %1810 = vmatpush1.bf16.msra.mxu0 %v1773
      %1811 = vmatprep.subr.bf16.mxu0 0
      %1812 = vmatpush1.bf16.msra.mxu0 %v1774
      %1813 = vmatprep.subr.bf16.mxu0 0
      %1814 = vmatpush1.bf16.msra.mxu0 %v1775
      %1815 = vmatprep.subr.bf16.mxu0 0
      %1816 = vmatpush1.bf16.msra.mxu0 %v1776
      %1817 = vmatprep.subr.bf16.mxu0 0
      %1818 = vmatpush1.bf16.msra.mxu0 %v1777
      %1819 = vmatprep.subr.bf16.mxu0 0
      %1820 = vmatpush1.bf16.msra.mxu0 %v1778
      %1821 = vmatprep.subr.bf16.mxu0 0
      %1822 = vmatpush1.bf16.msra.mxu0 %v1779
      %1823 = vmatprep.subr.bf16.mxu0 0
      %1824 = vmatpush1.bf16.msra.mxu0 %v1780
      %1825 = vmatprep.subr.bf16.mxu0 0
      %1826 = vmatpush1.bf16.msra.mxu0 %v1781
      %1827 = vmatprep.subr.bf16.mxu0 0
      %1828 = vmatpush1.bf16.msra.mxu0 %v1782
      %1829 = vmatprep.subr.bf16.mxu0 0
      %1830 = vmatpush1.bf16.msra.mxu0 %v1783
      %1831 = vmatprep.subr.bf16.mxu0 0
      %1832 = vmatpush1.bf16.msra.mxu0 %v1784
      %1833 = vmatprep.mubr.bf16.mxu0 %v1672
      %1834 = vmatmul.mubr.bf16.gmra.mrb[0].mxu0 %v1671
      %v1835 = vpop.f32.mrb[0].mxu0
      %v1836 = vadd.f32 0.0, %v1835
      %v1837 = vpop.f32.mrb[0].mxu0
      %v1838 = vpop.f32.mrb[0].mxu0
      %v1839 = vadd.f32 0.0, %v1838
      %v1840 = vpop.f32.mrb[0].mxu0
      %1841 = vdwg.mxu0
      %v1842 = vadd.f32 %v1447, %v1836
      %v1843 = vadd.f32 %v1448, %v1839
      %v1844 = vlaneseq
      %v1845 = vshrl.u32 %v1844, 7
      %v1846 = vsub.s32 5, %v1845
      %v1847 = vrot.slane %v521, %v1846
      %v1848 = vadd.f32 %v1842, %v1847
      %v1849 = vadd.f32 %v1843, %v1847
      %1850 = vst [vmem:[%s364] sm:$0xff] %v1848
      %1851 = vst [vmem:[%s364 + $0x8] sm:$0xff] %v1849
      %s1852 = smul.u32 2, %s21
      %p1853 = scmp.lt.s32.totalorder %s1852, 3
      %s1854 = scalar_select %p1853, %s1852, 3
      %s1855 = smul.addr %s1854, 8
      %s1856 = scalar_lea.vmem %s10, %s1855
      // Predicated region
      $region61: #{vision_tower_dynamic_s2_forward.1} parent=59 // pred_check
        %p1857 = pneg %p254
      $region62: #{vision_tower_dynamic_s2_forward.1} parent=59 // pred_check_branch
        %1859 = sbr.rel (%p1857) target = $region64
      $region63: #{vision_tower_dynamic_s2_forward.1} parent=59 // pred_region
        %s1860 = smul.u32 2, %s21
      $region64: #{vision_tower_dynamic_s2_forward.1} parent=59 // pred_fallthru
        _
    $region60: #{vision_tower_dynamic_s2_forward.1} parent=5 // pred_fallthru
      _
    %p1861 = scmp.le.s32.totalorder 2, %s16
    // Predicated region
    $region65: #{vision_tower_dynamic_s2_forward.1} parent=5 // pred_check
      %p1862 = pneg %p1861
    $region66: #{vision_tower_dynamic_s2_forward.1} parent=5 // pred_check_branch
      %1864 = sbr.rel (%p1862) target = $region68
    $region67: #{vision_tower_dynamic_s2_forward.1} parent=5 // pred_region
      %s1865 = ssub.s32 %s16, 2
      // Predicated region
      $region69: #{vision_tower_dynamic_s2_forward.1} parent=67 // pred_check
        %p1866 = pneg %p260
      $region70: #{vision_tower_dynamic_s2_forward.1} parent=67 // pred_check_branch
        %1868 = sbr.rel (%p1866) target = $region72
      $region71: #{vision_tower_dynamic_s2_forward.1} parent=67 // pred_region
        %s1869 = smul.u32 2, %s22
        %p1870 = scmp.lt.s32.totalorder %s1869, 3
        %s1871 = scalar_select %p1870, %s1869, 3
        %s1872 = smul.addr %s1871, 8
        %s1873 = scalar_lea.vmem %s10, %s1872
      $region72: #{vision_tower_dynamic_s2_forward.1} parent=67 // pred_fallthru
        _
    $region68: #{vision_tower_dynamic_s2_forward.1} parent=5 // pred_fallthru
      _
  $region6: #{vision_tower_dynamic_s2_forward.1} parent=0 // loop_footer
    %s20 = sadd.s32 1, %s16
  $region7: #{vision_tower_dynamic_s2_forward.1} parent=0 // loop_footer_branch
    %15 = sbr.rel target = $region3
  $region8: #{vision_tower_dynamic_s2_forward.1} parent=0 // loop_exit
    _

</llo_original>
